<compile_context>
chip_gen: v7x
topology: tpu7x:2x2x1
jax: 0.10.0
libtpu: 0.0.40
codegen_flags: <defaults>
</compile_context>

<pallas_src>
import functools

import jax
import jax.numpy as jnp
from jax.experimental import pallas as pl
from jax.experimental.pallas import tpu as pltpu


def _mlp_kernel(xt_ref, w1_ref, b1_ref, w2_ref, b2_ref, w3_ref, b3_ref,
                w4_ref, b4_ref, o_ref):
    # x tile: (D, block_b) bf16, feature-major: features on sublanes, batch on the
    # 128-wide lane axis.  Every intermediate and the output stay lane-dense.
    xt = xt_ref[...]

    # Layer 1: (128, D) @ (D, block_b) on the MXU, f32 accumulation.
    h = jnp.dot(w1_ref[...], xt, preferred_element_type=jnp.float32)   # (128, block_b)
    h = jnp.maximum(h + b1_ref[...], 0.0).astype(xt.dtype)

    # Layer 2: (64, 128) @ (128, block_b).
    h = jnp.dot(w2_ref[...], h, preferred_element_type=jnp.float32)
    h = jnp.maximum(h + b2_ref[...], 0.0).astype(xt.dtype)

    # Layer 3: (32, 64) @ (64, block_b).
    h = jnp.dot(w3_ref[...], h, preferred_element_type=jnp.float32)
    h = jnp.maximum(h + b3_ref[...], 0.0)                              # keep f32 for layer 4

    # Layer 4 (32 -> 1): VPU multiply + cross-sublane (XLU) reduce, f32 throughout.
    # (Optional A/B on v6e: a (1,32)@(32,block_b) MXU dot offloads the VALU slot.)
    out = jnp.sum(h * w4_ref[...], axis=0, keepdims=True) + b4_ref[0]  # (1, block_b)
    o_ref[...] = out.astype(o_ref.dtype)


def _pick_block_b(B, D, *, target=4096, min_cores=2):
    """Largest 512-multiple tile that (a) leaves >= min_cores grid steps when B
    allows it and (b) keeps the per-core VMEM footprint under ~24 MiB."""
    per_core = -(-B // min_cores)                 # ceil(B / min_cores)
    per_core = -(-per_core // 512) * 512          # round up to a multiple of 512
    bb = max(512, min(target, per_core))

    def vmem_bytes(b):
        x_buf = 2 * 2 * D * b                     # double-buffered bf16 (D, b) x tile
        inter = b * (128 + 64 + 32) * (4 + 2)     # f32 activations + bf16 copies
        out_buf = 2 * 4 * b                       # double-buffered f32 (1, b) output
        return x_buf + inter + out_buf

    while bb > 512 and vmem_bytes(bb) > 24 * 1024 * 1024:
        bb -= 512
    return bb


@functools.partial(jax.jit, static_argnames=("block_b", "compute_dtype"))
def regression_model_forward(x, params, *, block_b=None, compute_dtype=jnp.bfloat16):
    """x: [B, input_size] float32, params in PyTorch (out, in) layout -> [B, 1] f32."""
    w1, b1, w2, b2, w3, b3, w4, b4 = params
    B, D = x.shape
    if block_b is None:
        block_b = _pick_block_b(B, D)
    assert block_b % 128 == 0, "block_b must be a multiple of 128 (lane-dense tiles)"
    grid_b = pl.cdiv(B, block_b)                  # ragged final block, no jnp.pad copy

    # bf16 matmul operands (f32 accumulation in-kernel); biases / final layer f32.
    xt = x.T.astype(compute_dtype)                # (D, B): batch on lanes, fused cast
    w1c = w1.astype(compute_dtype)                # (128, D)  PyTorch (out, in) layout
    w2c = w2.astype(compute_dtype)                # (64, 128)
    w3c = w3.astype(compute_dtype)                # (32, 64)
    b1c = b1.reshape(-1, 1).astype(jnp.float32)   # (128, 1) column -> broadcast over lanes
    b2c = b2.reshape(-1, 1).astype(jnp.float32)   # (64, 1)
    b3c = b3.reshape(-1, 1).astype(jnp.float32)   # (32, 1)
    w4c = w4.reshape(-1, 1).astype(jnp.float32)   # (32, 1) column for VPU mul + reduce
    b4c = b4.reshape(1).astype(jnp.float32)       # (1,) scalar -> SMEM

    def whole(a):  # small constant operand: same full block every grid step (resident)
        return pl.BlockSpec(a.shape, lambda i: (0, 0))

    out_row = pl.pallas_call(
        _mlp_kernel,
        out_shape=jax.ShapeDtypeStruct((1, B), jnp.float32),
        grid_spec=pltpu.PrefetchScalarGridSpec(
            num_scalar_prefetch=0,
            grid=(grid_b,),
            in_specs=[
                pl.BlockSpec((D, block_b), lambda i: (0, i)),   # lane-dense x^T batch tile
                whole(w1c), whole(b1c),
                whole(w2c), whole(b2c),
                whole(w3c), whole(b3c),
                whole(w4c),
                pl.BlockSpec(memory_space=pltpu.MemorySpace.SMEM),  # scalar b4
            ],
            out_specs=pl.BlockSpec((1, block_b), lambda i: (0, i)),  # lane-dense output row
        ),
        compiler_params=pltpu.CompilerParams(
            dimension_semantics=("parallel",)),
    )(xt, w1c, b1c, w2c, b2c, w3c, b3c, w4c, b4c)

    # (1, B) lane-dense row -> (B, 1) column (wrapper-side layout plumbing only).
    return out_row.reshape(B, 1)


def init_params(key, input_size):
    """Deterministic init matching nn.Linear shapes (PyTorch (out, in) layout)."""
    dims = [(input_size, 128), (128, 64), (64, 32), (32, 1)]
    params = []
    for din, dout in dims:
        key, kw, kb = jax.random.split(key, 3)
        bound = din ** -0.5  # PyTorch default: uniform(-1/sqrt(in), 1/sqrt(in))
        w = jax.random.uniform(kw, (dout, din), jnp.float32, -bound, bound)
        b = jax.random.uniform(kb, (dout,), jnp.float32, -bound, bound)
        params += [w, b]
    return tuple(params)


def reference_forward(x, params, compute_dtype=jnp.bfloat16):
    """Pure-JAX reference with the same bf16-operand / f32-accumulation numerics."""
    w1, b1, w2, b2, w3, b3, w4, b4 = params
    h = x.astype(compute_dtype)
    h = jnp.maximum(jnp.dot(h, w1.T.astype(compute_dtype),
                            preferred_element_type=jnp.float32) + b1, 0.0)
    h = jnp.maximum(jnp.dot(h.astype(compute_dtype), w2.T.astype(compute_dtype),
                            preferred_element_type=jnp.float32) + b2, 0.0)
    h = jnp.maximum(jnp.dot(h.astype(compute_dtype), w3.T.astype(compute_dtype),
                            preferred_element_type=jnp.float32) + b3, 0.0)
    return jnp.dot(h, w4.T, preferred_element_type=jnp.float32) + b4


if __name__ == "__main__":
    key = jax.random.PRNGKey(0)
    kx, kp = jax.random.split(key)

    # B not a multiple of the tile: exercises the ragged final block (no pad copy)
    # and gives grid_b = 2 so both TensorCores get work on v7x.
    batch, input_size = 1000, 16
    x = jax.random.normal(kx, (batch, input_size), dtype=jnp.float32)
    params = init_params(kp, input_size)

    out = regression_model_forward(x, params)     # auto block_b (512 here -> grid of 2)
    out = jax.block_until_ready(out)

    ref = reference_forward(x, params)
    assert out.shape == (batch, 1), out.shape
    assert jnp.allclose(out, ref, atol=2e-3, rtol=2e-3), \
        f"max abs diff {float(jnp.max(jnp.abs(out - ref)))}"

    print("KERNEL_OK")
</pallas_src>

<mosaic_0001>
module attributes {stable_mosaic.version = 11 : i64} {
  func.func @_mlp_kernel(%arg0: i32, %arg1: memref<16x512xbf16, #tpu.memory_space<vmem>>, %arg2: memref<128x16xbf16, #tpu.memory_space<vmem>>, %arg3: memref<128x1xf32, #tpu.memory_space<vmem>>, %arg4: memref<64x128xbf16, #tpu.memory_space<vmem>>, %arg5: memref<64x1xf32, #tpu.memory_space<vmem>>, %arg6: memref<32x64xbf16, #tpu.memory_space<vmem>>, %arg7: memref<32x1xf32, #tpu.memory_space<vmem>>, %arg8: memref<32x1xf32, #tpu.memory_space<vmem>>, %arg9: memref<1xf32, #tpu.memory_space<smem>>, %arg10: memref<1x512xf32, #tpu.memory_space<vmem>>) attributes {dimension_semantics = [#tpu.dimension_semantics<parallel>], iteration_bounds = array<i64: 2>, scalar_prefetch = 0 : i64, scratch_operands = 0 : i64, tpu.core_type = #tpu.core_type<tc>, window_params = [{transform_indices = @transform_0, window_bounds = array<i64: 16, 512>}, {pipeline_mode = #tpu.pipeline_mode<synchronous>, transform_indices = @transform_1, window_bounds = array<i64: 128, 16>}, {pipeline_mode = #tpu.pipeline_mode<synchronous>, transform_indices = @transform_2, window_bounds = array<i64: 128, 1>}, {pipeline_mode = #tpu.pipeline_mode<synchronous>, transform_indices = @transform_3, window_bounds = array<i64: 64, 128>}, {pipeline_mode = #tpu.pipeline_mode<synchronous>, transform_indices = @transform_4, window_bounds = array<i64: 64, 1>}, {pipeline_mode = #tpu.pipeline_mode<synchronous>, transform_indices = @transform_5, window_bounds = array<i64: 32, 64>}, {pipeline_mode = #tpu.pipeline_mode<synchronous>, transform_indices = @transform_6, window_bounds = array<i64: 32, 1>}, {pipeline_mode = #tpu.pipeline_mode<synchronous>, transform_indices = @transform_7, window_bounds = array<i64: 32, 1>}, {transform_indices = @transform_8, window_bounds = array<i64: 1>}, {transform_indices = @transform_9, window_bounds = array<i64: 1, 512>}]} {
    %c0 = arith.constant 0 : index
    %c0_0 = arith.constant 0 : index
    %0 = vector.load %arg1[%c0, %c0_0] : memref<16x512xbf16, #tpu.memory_space<vmem>>, vector<16x512xbf16>
    %c0_1 = arith.constant 0 : index
    %c0_2 = arith.constant 0 : index
    %1 = vector.load %arg2[%c0_1, %c0_2] : memref<128x16xbf16, #tpu.memory_space<vmem>>, vector<128x16xbf16>
    %cst = arith.constant dense<0.000000e+00> : vector<128x512xf32>
    %2 = tpu.matmul %1, %0, %cst {dimension_numbers = #tpu.dot_dimension_numbers<[1], [0], [0], [1], [0, 0, 1, 1], [], []>} : vector<128x16xbf16>, vector<16x512xbf16>, vector<128x512xf32> -> vector<128x512xf32>
    %c0_3 = arith.constant 0 : index
    %c0_4 = arith.constant 0 : index
    %3 = vector.load %arg3[%c0_3, %c0_4] : memref<128x1xf32, #tpu.memory_space<vmem>>, vector<128x1xf32>
    %4 = vector.broadcast %3 : vector<128x1xf32> to vector<128x512xf32>
    %5 = arith.addf %2, %4 : vector<128x512xf32>
    %cst_5 = arith.constant 0.000000e+00 : f32
    %6 = vector.broadcast %cst_5 : f32 to vector<128x512xf32>
    %7 = arith.maximumf %5, %6 : vector<128x512xf32>
    %8 = arith.truncf %7 : vector<128x512xf32> to vector<128x512xbf16>
    %c0_6 = arith.constant 0 : index
    %c0_7 = arith.constant 0 : index
    %9 = vector.load %arg4[%c0_6, %c0_7] : memref<64x128xbf16, #tpu.memory_space<vmem>>, vector<64x128xbf16>
    %cst_8 = arith.constant dense<0.000000e+00> : vector<64x512xf32>
    %10 = tpu.matmul %9, %8, %cst_8 {dimension_numbers = #tpu.dot_dimension_numbers<[1], [0], [0], [1], [0, 0, 1, 1], [], []>} : vector<64x128xbf16>, vector<128x512xbf16>, vector<64x512xf32> -> vector<64x512xf32>
    %c0_9 = arith.constant 0 : index
    %c0_10 = arith.constant 0 : index
    %11 = vector.load %arg5[%c0_9, %c0_10] : memref<64x1xf32, #tpu.memory_space<vmem>>, vector<64x1xf32>
    %12 = vector.broadcast %11 : vector<64x1xf32> to vector<64x512xf32>
    %13 = arith.addf %10, %12 : vector<64x512xf32>
    %cst_11 = arith.constant 0.000000e+00 : f32
    %14 = vector.broadcast %cst_11 : f32 to vector<64x512xf32>
    %15 = arith.maximumf %13, %14 : vector<64x512xf32>
    %16 = arith.truncf %15 : vector<64x512xf32> to vector<64x512xbf16>
    %c0_12 = arith.constant 0 : index
    %c0_13 = arith.constant 0 : index
    %17 = vector.load %arg6[%c0_12, %c0_13] : memref<32x64xbf16, #tpu.memory_space<vmem>>, vector<32x64xbf16>
    %cst_14 = arith.constant dense<0.000000e+00> : vector<32x512xf32>
    %18 = tpu.matmul %17, %16, %cst_14 {dimension_numbers = #tpu.dot_dimension_numbers<[1], [0], [0], [1], [0, 0, 1, 1], [], []>} : vector<32x64xbf16>, vector<64x512xbf16>, vector<32x512xf32> -> vector<32x512xf32>
    %c0_15 = arith.constant 0 : index
    %c0_16 = arith.constant 0 : index
    %19 = vector.load %arg7[%c0_15, %c0_16] : memref<32x1xf32, #tpu.memory_space<vmem>>, vector<32x1xf32>
    %20 = vector.broadcast %19 : vector<32x1xf32> to vector<32x512xf32>
    %21 = arith.addf %18, %20 : vector<32x512xf32>
    %cst_17 = arith.constant 0.000000e+00 : f32
    %22 = vector.broadcast %cst_17 : f32 to vector<32x512xf32>
    %23 = arith.maximumf %21, %22 : vector<32x512xf32>
    %c0_18 = arith.constant 0 : index
    %c0_19 = arith.constant 0 : index
    %24 = vector.load %arg8[%c0_18, %c0_19] : memref<32x1xf32, #tpu.memory_space<vmem>>, vector<32x1xf32>
    %25 = vector.broadcast %24 : vector<32x1xf32> to vector<32x512xf32>
    %26 = arith.mulf %23, %25 : vector<32x512xf32>
    %cst_20 = arith.constant dense<0.000000e+00> : vector<512xf32>
    %27 = vector.multi_reduction <add>, %26, %cst_20 [0] : vector<32x512xf32> to vector<512xf32>
    %28 = vector.shape_cast %27 : vector<512xf32> to vector<1x512xf32>
    %c0_21 = arith.constant 0 : index
    %29 = memref.load %arg9[%c0_21] : memref<1xf32, #tpu.memory_space<smem>>
    %30 = vector.broadcast %29 : f32 to vector<1x512xf32>
    %31 = arith.addf %28, %30 : vector<1x512xf32>
    %c0_22 = arith.constant 0 : index
    %c0_23 = arith.constant 0 : index
    %32 = vector.load %arg10[%c0_22, %c0_23] : memref<1x512xf32, #tpu.memory_space<vmem>>, vector<1x512xf32>
    tpu.vector_store %arg10[%c0_22, %c0_23], %31 {strides = array<i32>} : memref<1x512xf32, #tpu.memory_space<vmem>>, vector<1x512xf32>,
    return
  }
  func.func @transform_0(%arg0: i32) -> (i32, i32) {
    %c0_i32 = arith.constant 0 : i32
    %c0_i32_0 = arith.constant 0 : i32
    return %c0_i32, %arg0 : i32, i32
  }
  func.func @transform_1(%arg0: i32) -> (i32, i32) {
    %c0_i32 = arith.constant 0 : i32
    %c0_i32_0 = arith.constant 0 : i32
    %c0_i32_1 = arith.constant 0 : i32
    return %c0_i32, %c0_i32_0 : i32, i32
  }
  func.func @transform_2(%arg0: i32) -> (i32, i32) {
    %c0_i32 = arith.constant 0 : i32
    %c0_i32_0 = arith.constant 0 : i32
    %c0_i32_1 = arith.constant 0 : i32
    return %c0_i32, %c0_i32_0 : i32, i32
  }
  func.func @transform_3(%arg0: i32) -> (i32, i32) {
    %c0_i32 = arith.constant 0 : i32
    %c0_i32_0 = arith.constant 0 : i32
    %c0_i32_1 = arith.constant 0 : i32
    return %c0_i32, %c0_i32_0 : i32, i32
  }
  func.func @transform_4(%arg0: i32) -> (i32, i32) {
    %c0_i32 = arith.constant 0 : i32
    %c0_i32_0 = arith.constant 0 : i32
    %c0_i32_1 = arith.constant 0 : i32
    return %c0_i32, %c0_i32_0 : i32, i32
  }
  func.func @transform_5(%arg0: i32) -> (i32, i32) {
    %c0_i32 = arith.constant 0 : i32
    %c0_i32_0 = arith.constant 0 : i32
    %c0_i32_1 = arith.constant 0 : i32
    return %c0_i32, %c0_i32_0 : i32, i32
  }
  func.func @transform_6(%arg0: i32) -> (i32, i32) {
    %c0_i32 = arith.constant 0 : i32
    %c0_i32_0 = arith.constant 0 : i32
    %c0_i32_1 = arith.constant 0 : i32
    return %c0_i32, %c0_i32_0 : i32, i32
  }
  func.func @transform_7(%arg0: i32) -> (i32, i32) {
    %c0_i32 = arith.constant 0 : i32
    %c0_i32_0 = arith.constant 0 : i32
    %c0_i32_1 = arith.constant 0 : i32
    return %c0_i32, %c0_i32_0 : i32, i32
  }
  func.func @transform_8(%arg0: i32) -> i32 {
    %c0_i32 = arith.constant 0 : i32
    %c0_i32_0 = arith.constant 0 : i32
    return %c0_i32 : i32
  }
  func.func @transform_9(%arg0: i32) -> (i32, i32) {
    %c0_i32 = arith.constant 0 : i32
    %c0_i32_0 = arith.constant 0 : i32
    return %c0_i32, %arg0 : i32, i32
  }
}

</mosaic_0001>

<llo_original>
// kernel: regression_model_forward.1
$region0: #{regression_model_forward.1}
  #allocation0 [shape = 'u32[]', space=smem, size = 0x4, offset = 0x4, fixed_abs, tag = 'smem constant byte address 0x4 - core index']
  #allocation1 [shape = 'u32[144,128]{1,0:T(1,128)}', space=vmem, size = 0x12000, scoped, tag = 'internal scratch']
  #allocation2 [shape = 'f32[1]{0:T(128)S(6)}', space=smem, size = 0x200, scoped, tag = 'scoped memory for regression_model_forward.1']
  %s0 = inlined_call_operand.vmem [shape: bf16[16,1000], index: 0, kind: input, shape index: {}]
  %s1 = inlined_call_operand.vmem [shape: bf16[128,16], index: 1, kind: input, shape index: {}]
  %s2 = inlined_call_operand.vmem [shape: f32[128,1], index: 2, kind: input, shape index: {}]
  %s3 = inlined_call_operand.vmem [shape: bf16[64,128], index: 3, kind: input, shape index: {}]
  %s4 = inlined_call_operand.vmem [shape: f32[64,1], index: 4, kind: input, shape index: {}]
  %s5 = inlined_call_operand.vmem [shape: bf16[32,64], index: 5, kind: input, shape index: {}]
  %s6 = inlined_call_operand.vmem [shape: f32[32,1], index: 6, kind: input, shape index: {}]
  %s7 = inlined_call_operand.vmem [shape: f32[32,1], index: 7, kind: input, shape index: {}]
  %s8 = inlined_call_operand.<no memory space> [shape: f32[1], index: 8, kind: input, shape index: {}]
  %s9 = inlined_call_operand.hbm [shape: f32[1,1000], index: 9, kind: output, shape index: {}]
  %s10 = sld [smem:[#allocation0]]
  $region92: #{regression_model_forward.1} parent=0
    _
  %s12 = ssub.s32 1, %s10
  %s13 = scalar_select 0, %s12, %s10
  %14 = sst [smem:[#allocation2]] %s8
  $region1: #{regression_model_forward.1} parent=0
    #allocation3 [shape = 'u8[32768]{0}', space=vmem, size = 0x8000, scoped, tag = 'input window, operand 0']
    #allocation4 [shape = 'u8[4096]{0}', space=vmem, size = 0x1000, scoped, tag = 'output window, operand 0']
    #allocation5 [shape = 's32[2]{0}', space=sflag, size = 0x8, scoped, tag = 'scoped memory for regression_model_forward.1']
    %15 = vsyncpa [#allocation5], 0
    %s16 = scalar_lea.sflag [#allocation5], 1
    %17 = vsyncpa %s16, 0
    loop: start=0, step=1, limit=4
    $region2: #{regression_model_forward.1} parent=1 // loop_pre_header
      _
    $region3: #{regression_model_forward.1} parent=1 // loop_header
      %s19 = sphi 0, %s23
      %p20 = scmp.ge.s32.totalorder %s19, 4
      %s29 = sphi 0, %s31
      %s32 = sphi 0, %s29
      %s33 = sphi 0, %s32
      %s49 = sphi 0, %s33
      %s53 = sphi 0, %s53
      %s55 = sphi 0, %s53
      %s56 = sphi 0, %s55
      %s70 = sphi 0, %s56
      %s74 = sphi 0, %s74
      %s76 = sphi 0, %s74
      %s77 = sphi 0, %s76
      %s91 = sphi 0, %s77
      %s95 = sphi 0, %s95
      %s97 = sphi 0, %s95
      %s98 = sphi 0, %s97
      %s112 = sphi 0, %s98
      %s116 = sphi 0, %s116
      %s118 = sphi 0, %s116
      %s119 = sphi 0, %s118
      %s133 = sphi 0, %s119
      %s137 = sphi 0, %s137
      %s139 = sphi 0, %s137
      %s140 = sphi 0, %s139
      %s154 = sphi 0, %s140
      %s158 = sphi 0, %s158
      %s160 = sphi 0, %s158
      %s161 = sphi 0, %s160
      %s175 = sphi 0, %s161
      %s179 = sphi 0, %s179
      %s181 = sphi 0, %s179
      %s182 = sphi 0, %s181
      %s196 = sphi 0, %s182
      %s200 = sphi 0, %s200
      %s202 = sphi 0, %s200
      %s203 = sphi 0, %s202
      %s217 = sphi 0, %s203
      %s223 = sphi 0, %s225
      %s226 = sphi 0, %s223
      %s227 = sphi 0, %s226
      %s243 = sphi 0, %s227
    $region4: #{regression_model_forward.1} parent=1 // loop_header_branch
      %22 = sbr.rel (%p20) target = $region8
    $region5: #{regression_model_forward.1} parent=1 // loop_body
      %s24 = ssub.s32 %s19, 1
      %s25 = ssub.s32 %s19, 2
      %s26 = sadd.s32 %s19, 1
      %s27 = ssub.s32 %s19, %s26
      %p28 = scmp.eq.s32.totalorder %s27, 0
      %s30 = sadd.s32 %s29, 1
      %s31 = scalar_select %p28, %s29, %s30
      %p34 = pneg %p28
      %p35 = scmp.eq.s32.totalorder %s19, 1
      %p36 = por %p34, %p35
      %p37 = scmp.ne.s32.totalorder %s29, %s32
      %p38 = scmp.eq.s32.totalorder %s19, 0
      %p39 = por %p37, %p38
      %p40 = scmp.ne.s32.totalorder %s29, %s32
      %p41 = scmp.eq.s32.totalorder %s24, 1
      %p42 = por %p40, %p41
      %p43 = scmp.ne.s32.totalorder %s32, %s33
      %p44 = scmp.eq.s32.totalorder %s24, 0
      %p45 = por %p43, %p44
      %p46 = scmp.ne.s32.totalorder %s32, %s33
      %p47 = scmp.eq.s32.totalorder %s25, 1
      %p48 = por %p46, %p47
      %p50 = scmp.ne.s32.totalorder %s33, %s49
      %p51 = scmp.eq.s32.totalorder %s25, 0
      %p52 = por %p50, %p51
      %s54 = sadd.s32 %s53, 1
      %p57 = scmp.eq.s32.totalorder %s19, 1
      %p58 = scmp.ne.s32.totalorder %s53, %s55
      %p59 = scmp.eq.s32.totalorder %s19, 0
      %p60 = por %p58, %p59
      %p61 = scmp.ne.s32.totalorder %s53, %s55
      %p62 = scmp.eq.s32.totalorder %s24, 1
      %p63 = por %p61, %p62
      %p64 = scmp.ne.s32.totalorder %s55, %s56
      %p65 = scmp.eq.s32.totalorder %s24, 0
      %p66 = por %p64, %p65
      %p67 = scmp.ne.s32.totalorder %s55, %s56
      %p68 = scmp.eq.s32.totalorder %s25, 1
      %p69 = por %p67, %p68
      %p71 = scmp.ne.s32.totalorder %s56, %s70
      %p72 = scmp.eq.s32.totalorder %s25, 0
      %p73 = por %p71, %p72
      %s75 = sadd.s32 %s74, 1
      %p78 = scmp.eq.s32.totalorder %s19, 1
      %p79 = scmp.ne.s32.totalorder %s74, %s76
      %p80 = scmp.eq.s32.totalorder %s19, 0
      %p81 = por %p79, %p80
      %p82 = scmp.ne.s32.totalorder %s74, %s76
      %p83 = scmp.eq.s32.totalorder %s24, 1
      %p84 = por %p82, %p83
      %p85 = scmp.ne.s32.totalorder %s76, %s77
      %p86 = scmp.eq.s32.totalorder %s24, 0
      %p87 = por %p85, %p86
      %p88 = scmp.ne.s32.totalorder %s76, %s77
      %p89 = scmp.eq.s32.totalorder %s25, 1
      %p90 = por %p88, %p89
      %p92 = scmp.ne.s32.totalorder %s77, %s91
      %p93 = scmp.eq.s32.totalorder %s25, 0
      %p94 = por %p92, %p93
      %s96 = sadd.s32 %s95, 1
      %p99 = scmp.eq.s32.totalorder %s19, 1
      %p100 = scmp.ne.s32.totalorder %s95, %s97
      %p101 = scmp.eq.s32.totalorder %s19, 0
      %p102 = por %p100, %p101
      %p103 = scmp.ne.s32.totalorder %s95, %s97
      %p104 = scmp.eq.s32.totalorder %s24, 1
      %p105 = por %p103, %p104
      %p106 = scmp.ne.s32.totalorder %s97, %s98
      %p107 = scmp.eq.s32.totalorder %s24, 0
      %p108 = por %p106, %p107
      %p109 = scmp.ne.s32.totalorder %s97, %s98
      %p110 = scmp.eq.s32.totalorder %s25, 1
      %p111 = por %p109, %p110
      %p113 = scmp.ne.s32.totalorder %s98, %s112
      %p114 = scmp.eq.s32.totalorder %s25, 0
      %p115 = por %p113, %p114
      %s117 = sadd.s32 %s116, 1
      %p120 = scmp.eq.s32.totalorder %s19, 1
      %p121 = scmp.ne.s32.totalorder %s116, %s118
      %p122 = scmp.eq.s32.totalorder %s19, 0
      %p123 = por %p121, %p122
      %p124 = scmp.ne.s32.totalorder %s116, %s118
      %p125 = scmp.eq.s32.totalorder %s24, 1
      %p126 = por %p124, %p125
      %p127 = scmp.ne.s32.totalorder %s118, %s119
      %p128 = scmp.eq.s32.totalorder %s24, 0
      %p129 = por %p127, %p128
      %p130 = scmp.ne.s32.totalorder %s118, %s119
      %p131 = scmp.eq.s32.totalorder %s25, 1
      %p132 = por %p130, %p131
      %p134 = scmp.ne.s32.totalorder %s119, %s133
      %p135 = scmp.eq.s32.totalorder %s25, 0
      %p136 = por %p134, %p135
      %s138 = sadd.s32 %s137, 1
      %p141 = scmp.eq.s32.totalorder %s19, 1
      %p142 = scmp.ne.s32.totalorder %s137, %s139
      %p143 = scmp.eq.s32.totalorder %s19, 0
      %p144 = por %p142, %p143
      %p145 = scmp.ne.s32.totalorder %s137, %s139
      %p146 = scmp.eq.s32.totalorder %s24, 1
      %p147 = por %p145, %p146
      %p148 = scmp.ne.s32.totalorder %s139, %s140
      %p149 = scmp.eq.s32.totalorder %s24, 0
      %p150 = por %p148, %p149
      %p151 = scmp.ne.s32.totalorder %s139, %s140
      %p152 = scmp.eq.s32.totalorder %s25, 1
      %p153 = por %p151, %p152
      %p155 = scmp.ne.s32.totalorder %s140, %s154
      %p156 = scmp.eq.s32.totalorder %s25, 0
      %p157 = por %p155, %p156
      %s159 = sadd.s32 %s158, 1
      %p162 = scmp.eq.s32.totalorder %s19, 1
      %p163 = scmp.ne.s32.totalorder %s158, %s160
      %p164 = scmp.eq.s32.totalorder %s19, 0
      %p165 = por %p163, %p164
      %p166 = scmp.ne.s32.totalorder %s158, %s160
      %p167 = scmp.eq.s32.totalorder %s24, 1
      %p168 = por %p166, %p167
      %p169 = scmp.ne.s32.totalorder %s160, %s161
      %p170 = scmp.eq.s32.totalorder %s24, 0
      %p171 = por %p169, %p170
      %p172 = scmp.ne.s32.totalorder %s160, %s161
      %p173 = scmp.eq.s32.totalorder %s25, 1
      %p174 = por %p172, %p173
      %p176 = scmp.ne.s32.totalorder %s161, %s175
      %p177 = scmp.eq.s32.totalorder %s25, 0
      %p178 = por %p176, %p177
      %s180 = sadd.s32 %s179, 1
      %p183 = scmp.eq.s32.totalorder %s19, 1
      %p184 = scmp.ne.s32.totalorder %s179, %s181
      %p185 = scmp.eq.s32.totalorder %s19, 0
      %p186 = por %p184, %p185
      %p187 = scmp.ne.s32.totalorder %s179, %s181
      %p188 = scmp.eq.s32.totalorder %s24, 1
      %p189 = por %p187, %p188
      %p190 = scmp.ne.s32.totalorder %s181, %s182
      %p191 = scmp.eq.s32.totalorder %s24, 0
      %p192 = por %p190, %p191
      %p193 = scmp.ne.s32.totalorder %s181, %s182
      %p194 = scmp.eq.s32.totalorder %s25, 1
      %p195 = por %p193, %p194
      %p197 = scmp.ne.s32.totalorder %s182, %s196
      %p198 = scmp.eq.s32.totalorder %s25, 0
      %p199 = por %p197, %p198
      %s201 = sadd.s32 %s200, 1
      %p204 = scmp.eq.s32.totalorder %s19, 1
      %p205 = scmp.ne.s32.totalorder %s200, %s202
      %p206 = scmp.eq.s32.totalorder %s19, 0
      %p207 = por %p205, %p206
      %p208 = scmp.ne.s32.totalorder %s200, %s202
      %p209 = scmp.eq.s32.totalorder %s24, 1
      %p210 = por %p208, %p209
      %p211 = scmp.ne.s32.totalorder %s202, %s203
      %p212 = scmp.eq.s32.totalorder %s24, 0
      %p213 = por %p211, %p212
      %p214 = scmp.ne.s32.totalorder %s202, %s203
      %p215 = scmp.eq.s32.totalorder %s25, 1
      %p216 = por %p214, %p215
      %p218 = scmp.ne.s32.totalorder %s203, %s217
      %p219 = scmp.eq.s32.totalorder %s25, 0
      %p220 = por %p218, %p219
      %s221 = ssub.s32 %s19, %s26
      %p222 = scmp.eq.s32.totalorder %s221, 0
      %s224 = sadd.s32 %s223, 1
      %s225 = scalar_select %p222, %s223, %s224
      %p228 = pneg %p222
      %p229 = scmp.eq.s32.totalorder %s19, 1
      %p230 = por %p228, %p229
      %p231 = scmp.ne.s32.totalorder %s223, %s226
      %p232 = scmp.eq.s32.totalorder %s19, 0
      %p233 = por %p231, %p232
      %p234 = scmp.ne.s32.totalorder %s223, %s226
      %p235 = scmp.eq.s32.totalorder %s24, 1
      %p236 = por %p234, %p235
      %p237 = scmp.ne.s32.totalorder %s226, %s227
      %p238 = scmp.eq.s32.totalorder %s24, 0
      %p239 = por %p237, %p238
      %p240 = scmp.ne.s32.totalorder %s226, %s227
      %p241 = scmp.eq.s32.totalorder %s25, 1
      %p242 = por %p240, %p241
      %p244 = scmp.ne.s32.totalorder %s227, %s243
      %p245 = scmp.eq.s32.totalorder %s25, 0
      %p246 = por %p244, %p245
      %p247 = scmp.le.s32.totalorder 1, %s19
      %p248 = scmp.lt.s32.totalorder %s19, 3
      %p249 = pnand %p247, %p248
      %p250 = pneg %p249
      // Predicated region
      $region9: #{regression_model_forward.1} parent=5 // pred_check
        _
      $region10: #{regression_model_forward.1} parent=5 // pred_check_branch
        %252 = sbr.rel (%p249) target = $region12
      $region11: #{regression_model_forward.1} parent=5 // pred_region
        %s253 = ssub.s32 %s19, 1
        // Predicated region
        $region13: #{regression_model_forward.1} parent=11 // pred_check
          %p254 = pneg %p66
        $region14: #{regression_model_forward.1} parent=11 // pred_check_branch
          %256 = sbr.rel (%p254) target = $region16
        $region15: #{regression_model_forward.1} parent=11 // pred_region
          _
        $region16: #{regression_model_forward.1} parent=11 // pred_fallthru
          _
        // Predicated region
        $region17: #{regression_model_forward.1} parent=11 // pred_check
          %p257 = pneg %p87
        $region18: #{regression_model_forward.1} parent=11 // pred_check_branch
          %259 = sbr.rel (%p257) target = $region20
        $region19: #{regression_model_forward.1} parent=11 // pred_region
          _
        $region20: #{regression_model_forward.1} parent=11 // pred_fallthru
          _
        // Predicated region
        $region21: #{regression_model_forward.1} parent=11 // pred_check
          %p260 = pneg %p108
        $region22: #{regression_model_forward.1} parent=11 // pred_check_branch
          %262 = sbr.rel (%p260) target = $region24
        $region23: #{regression_model_forward.1} parent=11 // pred_region
          _
        $region24: #{regression_model_forward.1} parent=11 // pred_fallthru
          _
        // Predicated region
        $region25: #{regression_model_forward.1} parent=11 // pred_check
          %p263 = pneg %p129
        $region26: #{regression_model_forward.1} parent=11 // pred_check_branch
          %265 = sbr.rel (%p263) target = $region28
        $region27: #{regression_model_forward.1} parent=11 // pred_region
          _
        $region28: #{regression_model_forward.1} parent=11 // pred_fallthru
          _
        // Predicated region
        $region29: #{regression_model_forward.1} parent=11 // pred_check
          %p266 = pneg %p150
        $region30: #{regression_model_forward.1} parent=11 // pred_check_branch
          %268 = sbr.rel (%p266) target = $region32
        $region31: #{regression_model_forward.1} parent=11 // pred_region
          _
        $region32: #{regression_model_forward.1} parent=11 // pred_fallthru
          _
        // Predicated region
        $region33: #{regression_model_forward.1} parent=11 // pred_check
          %p269 = pneg %p171
        $region34: #{regression_model_forward.1} parent=11 // pred_check_branch
          %271 = sbr.rel (%p269) target = $region36
        $region35: #{regression_model_forward.1} parent=11 // pred_region
          _
        $region36: #{regression_model_forward.1} parent=11 // pred_fallthru
          _
        // Predicated region
        $region37: #{regression_model_forward.1} parent=11 // pred_check
          %p272 = pneg %p192
        $region38: #{regression_model_forward.1} parent=11 // pred_check_branch
          %274 = sbr.rel (%p272) target = $region40
        $region39: #{regression_model_forward.1} parent=11 // pred_region
          _
        $region40: #{regression_model_forward.1} parent=11 // pred_fallthru
          _
        // Predicated region
        $region41: #{regression_model_forward.1} parent=11 // pred_check
          %p275 = pneg %p213
        $region42: #{regression_model_forward.1} parent=11 // pred_check_branch
          %277 = sbr.rel (%p275) target = $region44
        $region43: #{regression_model_forward.1} parent=11 // pred_region
          _
        $region44: #{regression_model_forward.1} parent=11 // pred_fallthru
          _
      $region12: #{regression_model_forward.1} parent=5 // pred_fallthru
        _
      %p278 = scmp.lt.s32.totalorder %s19, 2
      // Predicated region
      $region45: #{regression_model_forward.1} parent=5 // pred_check
        %p279 = pneg %p278
      $region46: #{regression_model_forward.1} parent=5 // pred_check_branch
        %281 = sbr.rel (%p279) target = $region48
      $region47: #{regression_model_forward.1} parent=5 // pred_region
        // Predicated region
        $region49: #{regression_model_forward.1} parent=47 // pred_check
          %p282 = pneg %p39
        $region50: #{regression_model_forward.1} parent=47 // pred_check_branch
          %284 = sbr.rel (%p282) target = $region52
        $region51: #{regression_model_forward.1} parent=47 // pred_region
          %s285 = sand.u32 %s29, 1
          %s286 = sand.u32 %s29, 1
          %s287 = smul.addr %s286, 32
          %s288 = scalar_lea.vmem [#allocation3], %s287
          %s289 = smul.u32 4, %s19
          %s290 = smul.addr %s289, 4
          %s291 = scalar_lea.vmem %s0, %s290
          // Predicated region
          $region53: #{regression_model_forward.1} parent=51 // pred_check
            _
          $region54: #{regression_model_forward.1} parent=51 // pred_check_branch
            %293 = sbr.rel (0) target = $region56
          $region55: #{regression_model_forward.1} parent=51 // pred_region
            // Predicated region
            $region57: #{regression_model_forward.1} parent=55 // pred_check
              _
            $region58: #{regression_model_forward.1} parent=55 // pred_check_branch
              %295 = sbr.rel (0) target = $region60
            $region59: #{regression_model_forward.1} parent=55 // pred_region
              loop: start=0, step=1, limit=1
              $region61: #{regression_model_forward.1} parent=59 // loop_pre_header
                _
              $region62: #{regression_model_forward.1} parent=59 // loop_header
                %s297 = sphi 0, %s301
                %p298 = scmp.ge.s32.totalorder %s297, 1
                %s302 = sphi %s291, %s291
                %s303 = sphi %s288, %s288
              $region63: #{regression_model_forward.1} parent=59 // loop_header_branch
                %300 = sbr.rel (%p298) target = $region67
              $region64: #{regression_model_forward.1} parent=59 // loop_body
                %v304 = vld [vmem:[%s302] sm:$0xff]
                %305 = vst [vmem:[%s303] sm:$0xff] %v304
                %v306 = vld [vmem:[%s302 + $0x8] sm:$0xff]
                %307 = vst [vmem:[%s303 + $0x8] sm:$0xff] %v306
                %v308 = vld [vmem:[%s302 + $0x20] sm:$0xff]
                %309 = vst [vmem:[%s303 + $0x10] sm:$0xff] %v308
                %v310 = vld [vmem:[%s302 + $0x28] sm:$0xff]
                %311 = vst [vmem:[%s303 + $0x18] sm:$0xff] %v310
              $region65: #{regression_model_forward.1} parent=59 // loop_footer
                %s301 = sadd.s32 1, %s297
              $region66: #{regression_model_forward.1} parent=59 // loop_footer_branch
                %296 = sbr.rel target = $region62
              $region67: #{regression_model_forward.1} parent=59 // loop_exit
                _
            $region60: #{regression_model_forward.1} parent=55 // pred_fallthru
              _
            // Predicated region
            $region68: #{regression_model_forward.1} parent=55 // pred_check
              _
            $region69: #{regression_model_forward.1} parent=55 // pred_check_branch
              %313 = sbr.rel target = $region71
            $region70: #{regression_model_forward.1} parent=55 // pred_region
              _
            $region71: #{regression_model_forward.1} parent=55 // pred_fallthru
              _
          $region56: #{regression_model_forward.1} parent=51 // pred_fallthru
            _
          %314 = vnop
        $region52: #{regression_model_forward.1} parent=47 // pred_fallthru
          _
      $region48: #{regression_model_forward.1} parent=5 // pred_fallthru
        _
      %p315 = scmp.le.s32.totalorder 1, %s19
      %p316 = scmp.lt.s32.totalorder %s19, 3
      %p317 = pnand %p315, %p316
      %p318 = pneg %p317
      // Predicated region
      $region72: #{regression_model_forward.1} parent=5 // pred_check
        _
      $region73: #{regression_model_forward.1} parent=5 // pred_check_branch
        %320 = sbr.rel (%p317) target = $region75
      $region74: #{regression_model_forward.1} parent=5 // pred_region
        %s321 = ssub.s32 %s19, 1
        %s322 = sand.u32 %s32, 1
        %s323 = sand.u32 %s32, 1
        %s324 = smul.addr %s323, 32
        %s325 = scalar_lea.vmem [#allocation3], %s324
        // Predicated region
        $region76: #{regression_model_forward.1} parent=74 // pred_check
          %p326 = pneg %p45
        $region77: #{regression_model_forward.1} parent=74 // pred_check_branch
          %328 = sbr.rel (%p326) target = $region79
        $region78: #{regression_model_forward.1} parent=74 // pred_region
          _
        $region79: #{regression_model_forward.1} parent=74 // pred_fallthru
          _
        %s329 = sand.u32 %s32, 1
        %s330 = sand.u32 %s32, 1
        %s331 = smul.addr %s330, 32
        %s332 = scalar_lea.vmem [#allocation3], %s331
        %p333 = pneg %p45
        %p334 = pneg %p42
        %p335 = pneg %p66
        %p336 = pneg %p63
        %p337 = pneg %p87
        %p338 = pneg %p84
        %p339 = pneg %p108
        %p340 = pneg %p105
        %p341 = pneg %p129
        %p342 = pneg %p126
        %p343 = pneg %p150
        %p344 = pneg %p147
        %p345 = pneg %p171
        %p346 = pneg %p168
        %p347 = pneg %p192
        %p348 = pneg %p189
        %p349 = pneg %p213
        %p350 = pneg %p210
        %p351 = pneg %p239
        %p352 = pneg %p236
        %s353 = sand.u32 %s226, 1
        %s354 = scalar_lea.sflag [#allocation5], %s353
        %s355 = sand.u32 %s226, 1
        %s356 = smul.addr %s355, 4
        %s357 = scalar_lea.vmem [#allocation4], %s356
        %s358 = smul.u32 4, %s24
        %s359 = smul.u32 4, %s24
        %v361 = vld [vmem:[%s325] sm:$0xff]
        %v362 = vld [vmem:[%s325 + $0x8] sm:$0xff]
        %v363 = vld [vmem:[%s325 + $0x10] sm:$0xff]
        %v364 = vld [vmem:[%s325 + $0x18] sm:$0xff]
        %v365 = vld [vmem:[%s1] sm:$0xf]
        %v366 = vld [vmem:[%s1 + $0x4] sm:$0xf]
        %v367 = vld [vmem:[%s1 + $0x8] sm:$0xf]
        %v368 = vld [vmem:[%s1 + $0xc] sm:$0xf]
        %v369 = vld [vmem:[%s1 + $0x10] sm:$0xf]
        %v370 = vld [vmem:[%s1 + $0x14] sm:$0xf]
        %v371 = vld [vmem:[%s1 + $0x18] sm:$0xf]
        %v372 = vld [vmem:[%s1 + $0x1c] sm:$0xf]
        %v373 = vld [vmem:[%s1 + $0x20] sm:$0xf]
        %v374 = vld [vmem:[%s1 + $0x24] sm:$0xf]
        %v375 = vld [vmem:[%s1 + $0x28] sm:$0xf]
        %v376 = vld [vmem:[%s1 + $0x2c] sm:$0xf]
        %v377 = vld [vmem:[%s1 + $0x30] sm:$0xf]
        %v378 = vld [vmem:[%s1 + $0x34] sm:$0xf]
        %v379 = vld [vmem:[%s1 + $0x38] sm:$0xf]
        %v380 = vld [vmem:[%s1 + $0x3c] sm:$0xf]
        %v381 = vld [vmem:[%s2] sm:$0xff]
        %v382 = vld [vmem:[%s2 + $0x8] sm:$0xff]
        %v383 = vld [vmem:[%s2 + $0x10] sm:$0xff]
        %v384 = vld [vmem:[%s2 + $0x18] sm:$0xff]
        %v385 = vld [vmem:[%s2 + $0x20] sm:$0xff]
        %v386 = vld [vmem:[%s2 + $0x28] sm:$0xff]
        %v387 = vld [vmem:[%s2 + $0x30] sm:$0xff]
        %v388 = vld [vmem:[%s2 + $0x38] sm:$0xff]
        %v389 = vld [vmem:[%s2 + $0x40] sm:$0xff]
        %v390 = vld [vmem:[%s2 + $0x48] sm:$0xff]
        %v391 = vld [vmem:[%s2 + $0x50] sm:$0xff]
        %v392 = vld [vmem:[%s2 + $0x58] sm:$0xff]
        %v393 = vld [vmem:[%s2 + $0x60] sm:$0xff]
        %v394 = vld [vmem:[%s2 + $0x68] sm:$0xff]
        %v395 = vld [vmem:[%s2 + $0x70] sm:$0xff]
        %v396 = vld [vmem:[%s2 + $0x78] sm:$0xff]
        %398 = vset.pattern.permute.xlu0 0
        %399 = vperm.xlu0 %398, %v381
        %v400 = vpop.permute.xlu0 %399
        %403 = vset.pattern.permute.xlu0 0
        %404 = vperm.xlu0 %403, %v382
        %v405 = vpop.permute.xlu0 %404
        %408 = vset.pattern.permute.xlu0 0
        %409 = vperm.xlu0 %408, %v383
        %v410 = vpop.permute.xlu0 %409
        %413 = vset.pattern.permute.xlu0 0
        %414 = vperm.xlu0 %413, %v384
        %v415 = vpop.permute.xlu0 %414
        %418 = vset.pattern.permute.xlu0 0
        %419 = vperm.xlu0 %418, %v385
        %v420 = vpop.permute.xlu0 %419
        %423 = vset.pattern.permute.xlu0 0
        %424 = vperm.xlu0 %423, %v386
        %v425 = vpop.permute.xlu0 %424
        %428 = vset.pattern.permute.xlu0 0
        %429 = vperm.xlu0 %428, %v387
        %v430 = vpop.permute.xlu0 %429
        %433 = vset.pattern.permute.xlu0 0
        %434 = vperm.xlu0 %433, %v388
        %v435 = vpop.permute.xlu0 %434
        %438 = vset.pattern.permute.xlu0 0
        %439 = vperm.xlu0 %438, %v389
        %v440 = vpop.permute.xlu0 %439
        %443 = vset.pattern.permute.xlu0 0
        %444 = vperm.xlu0 %443, %v390
        %v445 = vpop.permute.xlu0 %444
        %448 = vset.pattern.permute.xlu0 0
        %449 = vperm.xlu0 %448, %v391
        %v450 = vpop.permute.xlu0 %449
        %453 = vset.pattern.permute.xlu0 0
        %454 = vperm.xlu0 %453, %v392
        %v455 = vpop.permute.xlu0 %454
        %458 = vset.pattern.permute.xlu0 0
        %459 = vperm.xlu0 %458, %v393
        %v460 = vpop.permute.xlu0 %459
        %463 = vset.pattern.permute.xlu0 0
        %464 = vperm.xlu0 %463, %v394
        %v465 = vpop.permute.xlu0 %464
        %468 = vset.pattern.permute.xlu0 0
        %469 = vperm.xlu0 %468, %v395
        %v470 = vpop.permute.xlu0 %469
        %473 = vset.pattern.permute.xlu0 0
        %474 = vperm.xlu0 %473, %v396
        %v475 = vpop.permute.xlu0 %474
        %v493 = vunpack.c.l.b16 %v365
        %v494 = vunpack.c.l.b16 %v366
        %v495 = vunpack.c.l.b16 %v367
        %v496 = vunpack.c.l.b16 %v368
        %v497 = vunpack.c.l.b16 %v369
        %v498 = vunpack.c.l.b16 %v370
        %v499 = vunpack.c.l.b16 %v371
        %v500 = vunpack.c.l.b16 %v372
        %v501 = vunpack.c.l.b16 %v373
        %v502 = vunpack.c.l.b16 %v374
        %v503 = vunpack.c.l.b16 %v375
        %v504 = vunpack.c.l.b16 %v376
        %v505 = vunpack.c.l.b16 %v377
        %v506 = vunpack.c.l.b16 %v378
        %v507 = vunpack.c.l.b16 %v379
        %v508 = vunpack.c.l.b16 %v380
        %v509 = vpack.c.b16 %v494, %v493
        %v510 = vpack.c.b16 %v496, %v495
        %v511 = vpack.c.b16 %v498, %v497
        %v512 = vpack.c.b16 %v500, %v499
        %v513 = vpack.c.b16 %v502, %v501
        %v514 = vpack.c.b16 %v504, %v503
        %v515 = vpack.c.b16 %v506, %v505
        %v516 = vpack.c.b16 %v508, %v507
        %v521 = vunpack.c.l.b16 %v361
        %v522 = vunpack.c.h.b16 %v361
        %v523 = vunpack.c.l.b16 %v362
        %v524 = vunpack.c.h.b16 %v362
        %v525 = vunpack.c.l.b16 %v363
        %v526 = vunpack.c.h.b16 %v363
        %v527 = vunpack.c.l.b16 %v364
        %v528 = vunpack.c.h.b16 %v364
        %v529 = vpack.c.b16 %v525, %v521
        %v530 = vpack.c.b16 %v526, %v522
        %v531 = vpack.c.b16 %v527, %v523
        %v532 = vpack.c.b16 %v528, %v524
        %vm537 = vcmask 130048
        %v539 = vsel %vm537, %v509, 0
        %v542 = vsel %vm537, %v510, 0
        %v545 = vsel %vm537, %v511, 0
        %v548 = vsel %vm537, %v512, 0
        %v551 = vsel %vm537, %v513, 0
        %v554 = vsel %vm537, %v514, 0
        %v557 = vsel %vm537, %v515, 0
        %v560 = vsel %vm537, %v516, 0
        %562 = vmatprep.subr.bf16.mxu0 %v530
        %563 = vmatpush1.bf16.msra.mxu0 %v529
        %564 = vmatprep.subr.bf16.mxu0 0
        %565 = vmatpush1.bf16.msra.mxu0 0
        %566 = vmatprep.subr.bf16.mxu0 0
        %567 = vmatpush1.bf16.msra.mxu0 0
        %568 = vmatprep.subr.bf16.mxu0 0
        %569 = vmatpush1.bf16.msra.mxu0 0
        %570 = vmatprep.subr.bf16.mxu0 0
        %571 = vmatpush1.bf16.msra.mxu0 0
        %572 = vmatprep.subr.bf16.mxu0 0
        %573 = vmatpush1.bf16.msra.mxu0 0
        %574 = vmatprep.subr.bf16.mxu0 0
        %575 = vmatpush1.bf16.msra.mxu0 0
        %576 = vmatprep.subr.bf16.mxu0 0
        %577 = vmatpush1.bf16.msra.mxu0 0
        %578 = vmatprep.subr.bf16.mxu0 0
        %579 = vmatpush1.bf16.msra.mxu0 0
        %580 = vmatprep.subr.bf16.mxu0 0
        %581 = vmatpush1.bf16.msra.mxu0 0
        %582 = vmatprep.subr.bf16.mxu0 0
        %583 = vmatpush1.bf16.msra.mxu0 0
        %584 = vmatprep.subr.bf16.mxu0 0
        %585 = vmatpush1.bf16.msra.mxu0 0
        %586 = vmatprep.subr.bf16.mxu0 0
        %587 = vmatpush1.bf16.msra.mxu0 0
        %588 = vmatprep.subr.bf16.mxu0 0
        %589 = vmatpush1.bf16.msra.mxu0 0
        %590 = vmatprep.subr.bf16.mxu0 0
        %591 = vmatpush1.bf16.msra.mxu0 0
        %592 = vmatprep.subr.bf16.mxu0 0
        %593 = vmatpush1.bf16.msra.mxu0 0
        %594 = vmatprep.mubr.bf16.mxu0 0
        %595 = vmatmul.mubr.bf16.gmra.mrb[0].mxu0 %v539
        %v596 = vpop.f32.mrb[0].mxu0
        %v597 = vadd.f32 %v400, %v596
        %v598 = vpop.f32.mrb[0].mxu0
        %v599 = vadd.f32 %v400, %v598
        %v600 = vpop.f32.mrb[0].mxu0
        %v601 = vadd.f32 %v405, %v600
        %v602 = vpop.f32.mrb[0].mxu0
        %v603 = vadd.f32 %v405, %v602
        %604 = vmatprep.mubr.bf16.mxu0 0
        %605 = vmatmul.mubr.bf16.gmra.mrb[0].mxu0 %v542
        %v606 = vpop.f32.mrb[0].mxu0
        %v607 = vadd.f32 %v410, %v606
        %v608 = vpop.f32.mrb[0].mxu0
        %v609 = vadd.f32 %v410, %v608
        %v610 = vpop.f32.mrb[0].mxu0
        %v611 = vadd.f32 %v415, %v610
        %v612 = vpop.f32.mrb[0].mxu0
        %v613 = vadd.f32 %v415, %v612
        %614 = vmatprep.mubr.bf16.mxu0 0
        %615 = vmatmul.mubr.bf16.gmra.mrb[0].mxu0 %v545
        %v616 = vpop.f32.mrb[0].mxu0
        %v617 = vadd.f32 %v420, %v616
        %v618 = vpop.f32.mrb[0].mxu0
        %v619 = vadd.f32 %v420, %v618
        %v620 = vpop.f32.mrb[0].mxu0
        %v621 = vadd.f32 %v425, %v620
        %v622 = vpop.f32.mrb[0].mxu0
        %v623 = vadd.f32 %v425, %v622
        %624 = vmatprep.mubr.bf16.mxu0 0
        %625 = vmatmul.mubr.bf16.gmra.mrb[0].mxu0 %v548
        %v626 = vpop.f32.mrb[0].mxu0
        %v627 = vadd.f32 %v430, %v626
        %v628 = vpop.f32.mrb[0].mxu0
        %v629 = vadd.f32 %v430, %v628
        %v630 = vpop.f32.mrb[0].mxu0
        %v631 = vadd.f32 %v435, %v630
        %v632 = vpop.f32.mrb[0].mxu0
        %v633 = vadd.f32 %v435, %v632
        %634 = vmatprep.mubr.bf16.mxu0 0
        %635 = vmatmul.mubr.bf16.gmra.mrb[0].mxu0 %v551
        %v636 = vpop.f32.mrb[0].mxu0
        %v637 = vadd.f32 %v440, %v636
        %v638 = vpop.f32.mrb[0].mxu0
        %v639 = vadd.f32 %v440, %v638
        %v640 = vpop.f32.mrb[0].mxu0
        %v641 = vadd.f32 %v445, %v640
        %v642 = vpop.f32.mrb[0].mxu0
        %v643 = vadd.f32 %v445, %v642
        %644 = vmatprep.mubr.bf16.mxu0 0
        %645 = vmatmul.mubr.bf16.gmra.mrb[0].mxu0 %v554
        %v646 = vpop.f32.mrb[0].mxu0
        %v647 = vadd.f32 %v450, %v646
        %v648 = vpop.f32.mrb[0].mxu0
        %v649 = vadd.f32 %v450, %v648
        %v650 = vpop.f32.mrb[0].mxu0
        %v651 = vadd.f32 %v455, %v650
        %v652 = vpop.f32.mrb[0].mxu0
        %v653 = vadd.f32 %v455, %v652
        %654 = vmatprep.mubr.bf16.mxu0 0
        %655 = vmatmul.mubr.bf16.gmra.mrb[0].mxu0 %v557
        %v656 = vpop.f32.mrb[0].mxu0
        %v657 = vadd.f32 %v460, %v656
        %v658 = vpop.f32.mrb[0].mxu0
        %v659 = vadd.f32 %v460, %v658
        %v660 = vpop.f32.mrb[0].mxu0
        %v661 = vadd.f32 %v465, %v660
        %v662 = vpop.f32.mrb[0].mxu0
        %v663 = vadd.f32 %v465, %v662
        %664 = vmatprep.mubr.bf16.mxu0 0
        %665 = vmatmul.mubr.bf16.gmra.mrb[0].mxu0 %v560
        %v666 = vpop.f32.mrb[0].mxu0
        %v667 = vadd.f32 %v470, %v666
        %v668 = vpop.f32.mrb[0].mxu0
        %v669 = vadd.f32 %v470, %v668
        %v670 = vpop.f32.mrb[0].mxu0
        %v671 = vadd.f32 %v475, %v670
        %v672 = vpop.f32.mrb[0].mxu0
        %v673 = vadd.f32 %v475, %v672
        %674 = vdwg.mxu0
        %675 = vmatprep.subr.bf16.mxu0 %v532
        %676 = vmatpush1.bf16.msra.mxu0 %v531
        %677 = vmatprep.subr.bf16.mxu0 0
        %678 = vmatpush1.bf16.msra.mxu0 0
        %679 = vmatprep.subr.bf16.mxu0 0
        %680 = vmatpush1.bf16.msra.mxu0 0
        %681 = vmatprep.subr.bf16.mxu0 0
        %682 = vmatpush1.bf16.msra.mxu0 0
        %683 = vmatprep.subr.bf16.mxu0 0
        %684 = vmatpush1.bf16.msra.mxu0 0
        %685 = vmatprep.subr.bf16.mxu0 0
        %686 = vmatpush1.bf16.msra.mxu0 0
        %687 = vmatprep.subr.bf16.mxu0 0
        %688 = vmatpush1.bf16.msra.mxu0 0
        %689 = vmatprep.subr.bf16.mxu0 0
        %690 = vmatpush1.bf16.msra.mxu0 0
        %691 = vmatprep.subr.bf16.mxu0 0
        %692 = vmatpush1.bf16.msra.mxu0 0
        %693 = vmatprep.subr.bf16.mxu0 0
        %694 = vmatpush1.bf16.msra.mxu0 0
        %695 = vmatprep.subr.bf16.mxu0 0
        %696 = vmatpush1.bf16.msra.mxu0 0
        %697 = vmatprep.subr.bf16.mxu0 0
        %698 = vmatpush1.bf16.msra.mxu0 0
        %699 = vmatprep.subr.bf16.mxu0 0
        %700 = vmatpush1.bf16.msra.mxu0 0
        %701 = vmatprep.subr.bf16.mxu0 0
        %702 = vmatpush1.bf16.msra.mxu0 0
        %703 = vmatprep.subr.bf16.mxu0 0
        %704 = vmatpush1.bf16.msra.mxu0 0
        %705 = vmatprep.subr.bf16.mxu0 0
        %706 = vmatpush1.bf16.msra.mxu0 0
        %707 = vmatprep.mubr.bf16.mxu0 0
        %708 = vmatmul.mubr.bf16.gmra.mrb[0].mxu0 %v539
        %v709 = vpop.f32.mrb[0].mxu0
        %v710 = vadd.f32 %v400, %v709
        %v711 = vpop.f32.mrb[0].mxu0
        %v712 = vadd.f32 %v400, %v711
        %v713 = vpop.f32.mrb[0].mxu0
        %v714 = vadd.f32 %v405, %v713
        %v715 = vpop.f32.mrb[0].mxu0
        %v716 = vadd.f32 %v405, %v715
        %717 = vmatprep.mubr.bf16.mxu0 0
        %718 = vmatmul.mubr.bf16.gmra.mrb[0].mxu0 %v542
        %v719 = vpop.f32.mrb[0].mxu0
        %v720 = vadd.f32 %v410, %v719
        %v721 = vpop.f32.mrb[0].mxu0
        %v722 = vadd.f32 %v410, %v721
        %v723 = vpop.f32.mrb[0].mxu0
        %v724 = vadd.f32 %v415, %v723
        %v725 = vpop.f32.mrb[0].mxu0
        %v726 = vadd.f32 %v415, %v725
        %727 = vmatprep.mubr.bf16.mxu0 0
        %728 = vmatmul.mubr.bf16.gmra.mrb[0].mxu0 %v545
        %v729 = vpop.f32.mrb[0].mxu0
        %v730 = vadd.f32 %v420, %v729
        %v731 = vpop.f32.mrb[0].mxu0
        %v732 = vadd.f32 %v420, %v731
        %v733 = vpop.f32.mrb[0].mxu0
        %v734 = vadd.f32 %v425, %v733
        %v735 = vpop.f32.mrb[0].mxu0
        %v736 = vadd.f32 %v425, %v735
        %737 = vmatprep.mubr.bf16.mxu0 0
        %738 = vmatmul.mubr.bf16.gmra.mrb[0].mxu0 %v548
        %v739 = vpop.f32.mrb[0].mxu0
        %v740 = vadd.f32 %v430, %v739
        %v741 = vpop.f32.mrb[0].mxu0
        %v742 = vadd.f32 %v430, %v741
        %v743 = vpop.f32.mrb[0].mxu0
        %v744 = vadd.f32 %v435, %v743
        %v745 = vpop.f32.mrb[0].mxu0
        %v746 = vadd.f32 %v435, %v745
        %747 = vmatprep.mubr.bf16.mxu0 0
        %748 = vmatmul.mubr.bf16.gmra.mrb[0].mxu0 %v551
        %v749 = vpop.f32.mrb[0].mxu0
        %v750 = vadd.f32 %v440, %v749
        %v751 = vpop.f32.mrb[0].mxu0
        %v752 = vadd.f32 %v440, %v751
        %v753 = vpop.f32.mrb[0].mxu0
        %v754 = vadd.f32 %v445, %v753
        %v755 = vpop.f32.mrb[0].mxu0
        %v756 = vadd.f32 %v445, %v755
        %757 = vmatprep.mubr.bf16.mxu0 0
        %758 = vmatmul.mubr.bf16.gmra.mrb[0].mxu0 %v554
        %v759 = vpop.f32.mrb[0].mxu0
        %v760 = vadd.f32 %v450, %v759
        %v761 = vpop.f32.mrb[0].mxu0
        %v762 = vadd.f32 %v450, %v761
        %v763 = vpop.f32.mrb[0].mxu0
        %v764 = vadd.f32 %v455, %v763
        %v765 = vpop.f32.mrb[0].mxu0
        %v766 = vadd.f32 %v455, %v765
        %767 = vmatprep.mubr.bf16.mxu0 0
        %768 = vmatmul.mubr.bf16.gmra.mrb[0].mxu0 %v557
        %v769 = vpop.f32.mrb[0].mxu0
        %v770 = vadd.f32 %v460, %v769
        %v771 = vpop.f32.mrb[0].mxu0
        %v772 = vadd.f32 %v460, %v771
        %v773 = vpop.f32.mrb[0].mxu0
        %v774 = vadd.f32 %v465, %v773
        %v775 = vpop.f32.mrb[0].mxu0
        %v776 = vadd.f32 %v465, %v775
        %777 = vmatprep.mubr.bf16.mxu0 0
        %778 = vmatmul.mubr.bf16.gmra.mrb[0].mxu0 %v560
        %v779 = vpop.f32.mrb[0].mxu0
        %v780 = vadd.f32 %v470, %v779
        %v781 = vpop.f32.mrb[0].mxu0
        %v782 = vadd.f32 %v470, %v781
        %v783 = vpop.f32.mrb[0].mxu0
        %v784 = vadd.f32 %v475, %v783
        %v785 = vpop.f32.mrb[0].mxu0
        %v786 = vadd.f32 %v475, %v785
        %787 = vdwg.mxu0
        %v788 = vmax.f32 %v597, 0.0
        %v789 = vmax.f32 %v599, 0.0
        %v790 = vmax.f32 %v710, 0.0
        %v791 = vmax.f32 %v712, 0.0
        %v792 = vmax.f32 %v601, 0.0
        %v793 = vmax.f32 %v603, 0.0
        %v794 = vmax.f32 %v714, 0.0
        %v795 = vmax.f32 %v716, 0.0
        %v796 = vmax.f32 %v607, 0.0
        %v797 = vmax.f32 %v609, 0.0
        %v798 = vmax.f32 %v720, 0.0
        %v799 = vmax.f32 %v722, 0.0
        %v800 = vmax.f32 %v611, 0.0
        %v801 = vmax.f32 %v613, 0.0
        %v802 = vmax.f32 %v724, 0.0
        %v803 = vmax.f32 %v726, 0.0
        %v804 = vmax.f32 %v617, 0.0
        %v805 = vmax.f32 %v619, 0.0
        %v806 = vmax.f32 %v730, 0.0
        %v807 = vmax.f32 %v732, 0.0
        %v808 = vmax.f32 %v621, 0.0
        %v809 = vmax.f32 %v623, 0.0
        %v810 = vmax.f32 %v734, 0.0
        %v811 = vmax.f32 %v736, 0.0
        %v812 = vmax.f32 %v627, 0.0
        %v813 = vmax.f32 %v629, 0.0
        %v814 = vmax.f32 %v740, 0.0
        %v815 = vmax.f32 %v742, 0.0
        %v816 = vmax.f32 %v631, 0.0
        %v817 = vmax.f32 %v633, 0.0
        %v818 = vmax.f32 %v744, 0.0
        %v819 = vmax.f32 %v746, 0.0
        %v820 = vmax.f32 %v637, 0.0
        %v821 = vmax.f32 %v639, 0.0
        %v822 = vmax.f32 %v750, 0.0
        %v823 = vmax.f32 %v752, 0.0
        %v824 = vmax.f32 %v641, 0.0
        %v825 = vmax.f32 %v643, 0.0
        %v826 = vmax.f32 %v754, 0.0
        %v827 = vmax.f32 %v756, 0.0
        %v828 = vmax.f32 %v647, 0.0
        %v829 = vmax.f32 %v649, 0.0
        %v830 = vmax.f32 %v760, 0.0
        %v831 = vmax.f32 %v762, 0.0
        %v832 = vmax.f32 %v651, 0.0
        %v833 = vmax.f32 %v653, 0.0
        %v834 = vmax.f32 %v764, 0.0
        %v835 = vmax.f32 %v766, 0.0
        %v836 = vmax.f32 %v657, 0.0
        %v837 = vmax.f32 %v659, 0.0
        %v838 = vmax.f32 %v770, 0.0
        %v839 = vmax.f32 %v772, 0.0
        %v840 = vmax.f32 %v661, 0.0
        %v841 = vmax.f32 %v663, 0.0
        %v842 = vmax.f32 %v774, 0.0
        %v843 = vmax.f32 %v776, 0.0
        %v844 = vmax.f32 %v667, 0.0
        %v845 = vmax.f32 %v669, 0.0
        %v846 = vmax.f32 %v780, 0.0
        %v847 = vmax.f32 %v782, 0.0
        %v848 = vmax.f32 %v671, 0.0
        %v849 = vmax.f32 %v673, 0.0
        %v850 = vmax.f32 %v784, 0.0
        %v851 = vmax.f32 %v786, 0.0
        %v852 = vpack.c.bf16 %v792, %v788
        %v853 = vpack.c.bf16 %v793, %v789
        %v854 = vpack.c.bf16 %v794, %v790
        %v855 = vpack.c.bf16 %v795, %v791
        %v856 = vpack.c.bf16 %v800, %v796
        %v857 = vpack.c.bf16 %v801, %v797
        %v858 = vpack.c.bf16 %v802, %v798
        %v859 = vpack.c.bf16 %v803, %v799
        %v860 = vpack.c.bf16 %v808, %v804
        %v861 = vpack.c.bf16 %v809, %v805
        %v862 = vpack.c.bf16 %v810, %v806
        %v863 = vpack.c.bf16 %v811, %v807
        %v864 = vpack.c.bf16 %v816, %v812
        %v865 = vpack.c.bf16 %v817, %v813
        %v866 = vpack.c.bf16 %v818, %v814
        %v867 = vpack.c.bf16 %v819, %v815
        %v868 = vpack.c.bf16 %v824, %v820
        %v869 = vpack.c.bf16 %v825, %v821
        %v870 = vpack.c.bf16 %v826, %v822
        %v871 = vpack.c.bf16 %v827, %v823
        %v872 = vpack.c.bf16 %v832, %v828
        %v873 = vpack.c.bf16 %v833, %v829
        %v874 = vpack.c.bf16 %v834, %v830
        %v875 = vpack.c.bf16 %v835, %v831
        %v876 = vpack.c.bf16 %v840, %v836
        %v877 = vpack.c.bf16 %v841, %v837
        %v878 = vpack.c.bf16 %v842, %v838
        %v879 = vpack.c.bf16 %v843, %v839
        %v880 = vpack.c.bf16 %v848, %v844
        %v881 = vpack.c.bf16 %v849, %v845
        %v882 = vpack.c.bf16 %v850, %v846
        %v883 = vpack.c.bf16 %v851, %v847
        %v884 = vld [vmem:[%s3] sm:$0xf]
        %v885 = vld [vmem:[%s3 + $0x4] sm:$0xf]
        %v886 = vld [vmem:[%s3 + $0x8] sm:$0xf]
        %v887 = vld [vmem:[%s3 + $0xc] sm:$0xf]
        %v888 = vld [vmem:[%s3 + $0x10] sm:$0xf]
        %v889 = vld [vmem:[%s3 + $0x14] sm:$0xf]
        %v890 = vld [vmem:[%s3 + $0x18] sm:$0xf]
        %v891 = vld [vmem:[%s3 + $0x1c] sm:$0xf]
        %v892 = vld [vmem:[%s4] sm:$0xff]
        %v893 = vld [vmem:[%s4 + $0x8] sm:$0xff]
        %v894 = vld [vmem:[%s4 + $0x10] sm:$0xff]
        %v895 = vld [vmem:[%s4 + $0x18] sm:$0xff]
        %v896 = vld [vmem:[%s4 + $0x20] sm:$0xff]
        %v897 = vld [vmem:[%s4 + $0x28] sm:$0xff]
        %v898 = vld [vmem:[%s4 + $0x30] sm:$0xff]
        %v899 = vld [vmem:[%s4 + $0x38] sm:$0xff]
        %901 = vset.pattern.permute.xlu0 0
        %902 = vperm.xlu0 %901, %v892
        %v903 = vpop.permute.xlu0 %902
        %906 = vset.pattern.permute.xlu0 0
        %907 = vperm.xlu0 %906, %v893
        %v908 = vpop.permute.xlu0 %907
        %911 = vset.pattern.permute.xlu0 0
        %912 = vperm.xlu0 %911, %v894
        %v913 = vpop.permute.xlu0 %912
        %916 = vset.pattern.permute.xlu0 0
        %917 = vperm.xlu0 %916, %v895
        %v918 = vpop.permute.xlu0 %917
        %921 = vset.pattern.permute.xlu0 0
        %922 = vperm.xlu0 %921, %v896
        %v923 = vpop.permute.xlu0 %922
        %926 = vset.pattern.permute.xlu0 0
        %927 = vperm.xlu0 %926, %v897
        %v928 = vpop.permute.xlu0 %927
        %931 = vset.pattern.permute.xlu0 0
        %932 = vperm.xlu0 %931, %v898
        %v933 = vpop.permute.xlu0 %932
        %936 = vset.pattern.permute.xlu0 0
        %937 = vperm.xlu0 %936, %v899
        %v938 = vpop.permute.xlu0 %937
        %v948 = vunpack.c.l.b16 %v884
        %v949 = vunpack.c.l.b16 %v885
        %v950 = vunpack.c.l.b16 %v886
        %v951 = vunpack.c.l.b16 %v887
        %v952 = vunpack.c.l.b16 %v888
        %v953 = vunpack.c.l.b16 %v889
        %v954 = vunpack.c.l.b16 %v890
        %v955 = vunpack.c.l.b16 %v891
        %v956 = vpack.c.b16 %v949, %v948
        %v957 = vpack.c.b16 %v951, %v950
        %v958 = vpack.c.b16 %v953, %v952
        %v959 = vpack.c.b16 %v955, %v954
        %964 = vmatprep.subr.bf16.mxu0 %v853
        %965 = vmatpush1.bf16.msra.mxu0 %v852
        %966 = vmatprep.subr.bf16.mxu0 %v857
        %967 = vmatpush1.bf16.msra.mxu0 %v856
        %968 = vmatprep.subr.bf16.mxu0 %v861
        %969 = vmatpush1.bf16.msra.mxu0 %v860
        %970 = vmatprep.subr.bf16.mxu0 %v865
        %971 = vmatpush1.bf16.msra.mxu0 %v864
        %972 = vmatprep.subr.bf16.mxu0 %v869
        %973 = vmatpush1.bf16.msra.mxu0 %v868
        %974 = vmatprep.subr.bf16.mxu0 %v873
        %975 = vmatpush1.bf16.msra.mxu0 %v872
        %976 = vmatprep.subr.bf16.mxu0 %v877
        %977 = vmatpush1.bf16.msra.mxu0 %v876
        %978 = vmatprep.subr.bf16.mxu0 %v881
        %979 = vmatpush1.bf16.msra.mxu0 %v880
        %980 = vmatprep.subr.bf16.mxu0 0
        %981 = vmatpush1.bf16.msra.mxu0 0
        %982 = vmatprep.subr.bf16.mxu0 0
        %983 = vmatpush1.bf16.msra.mxu0 0
        %984 = vmatprep.subr.bf16.mxu0 0
        %985 = vmatpush1.bf16.msra.mxu0 0
        %986 = vmatprep.subr.bf16.mxu0 0
        %987 = vmatpush1.bf16.msra.mxu0 0
        %988 = vmatprep.subr.bf16.mxu0 0
        %989 = vmatpush1.bf16.msra.mxu0 0
        %990 = vmatprep.subr.bf16.mxu0 0
        %991 = vmatpush1.bf16.msra.mxu0 0
        %992 = vmatprep.subr.bf16.mxu0 0
        %993 = vmatpush1.bf16.msra.mxu0 0
        %994 = vmatprep.subr.bf16.mxu0 0
        %995 = vmatpush1.bf16.msra.mxu0 0
        %996 = vmatprep.mubr.bf16.mxu0 0
        %997 = vmatmul.mubr.bf16.gmra.mrb[0].mxu0 %v956
        %v998 = vpop.f32.mrb[0].mxu0
        %v999 = vadd.f32 %v903, %v998
        %v1000 = vpop.f32.mrb[0].mxu0
        %v1001 = vadd.f32 %v903, %v1000
        %v1002 = vpop.f32.mrb[0].mxu0
        %v1003 = vadd.f32 %v908, %v1002
        %v1004 = vpop.f32.mrb[0].mxu0
        %v1005 = vadd.f32 %v908, %v1004
        %1006 = vmatprep.mubr.bf16.mxu0 0
        %1007 = vmatmul.mubr.bf16.gmra.mrb[0].mxu0 %v957
        %v1008 = vpop.f32.mrb[0].mxu0
        %v1009 = vadd.f32 %v913, %v1008
        %v1010 = vpop.f32.mrb[0].mxu0
        %v1011 = vadd.f32 %v913, %v1010
        %v1012 = vpop.f32.mrb[0].mxu0
        %v1013 = vadd.f32 %v918, %v1012
        %v1014 = vpop.f32.mrb[0].mxu0
        %v1015 = vadd.f32 %v918, %v1014
        %1016 = vmatprep.mubr.bf16.mxu0 0
        %1017 = vmatmul.mubr.bf16.gmra.mrb[0].mxu0 %v958
        %v1018 = vpop.f32.mrb[0].mxu0
        %v1019 = vadd.f32 %v923, %v1018
        %v1020 = vpop.f32.mrb[0].mxu0
        %v1021 = vadd.f32 %v923, %v1020
        %v1022 = vpop.f32.mrb[0].mxu0
        %v1023 = vadd.f32 %v928, %v1022
        %v1024 = vpop.f32.mrb[0].mxu0
        %v1025 = vadd.f32 %v928, %v1024
        %1026 = vmatprep.mubr.bf16.mxu0 0
        %1027 = vmatmul.mubr.bf16.gmra.mrb[0].mxu0 %v959
        %v1028 = vpop.f32.mrb[0].mxu0
        %v1029 = vadd.f32 %v933, %v1028
        %v1030 = vpop.f32.mrb[0].mxu0
        %v1031 = vadd.f32 %v933, %v1030
        %v1032 = vpop.f32.mrb[0].mxu0
        %v1033 = vadd.f32 %v938, %v1032
        %v1034 = vpop.f32.mrb[0].mxu0
        %v1035 = vadd.f32 %v938, %v1034
        %1036 = vdwg.mxu0
        %1037 = vmatprep.subr.bf16.mxu0 %v855
        %1038 = vmatpush1.bf16.msra.mxu0 %v854
        %1039 = vmatprep.subr.bf16.mxu0 %v859
        %1040 = vmatpush1.bf16.msra.mxu0 %v858
        %1041 = vmatprep.subr.bf16.mxu0 %v863
        %1042 = vmatpush1.bf16.msra.mxu0 %v862
        %1043 = vmatprep.subr.bf16.mxu0 %v867
        %1044 = vmatpush1.bf16.msra.mxu0 %v866
        %1045 = vmatprep.subr.bf16.mxu0 %v871
        %1046 = vmatpush1.bf16.msra.mxu0 %v870
        %1047 = vmatprep.subr.bf16.mxu0 %v875
        %1048 = vmatpush1.bf16.msra.mxu0 %v874
        %1049 = vmatprep.subr.bf16.mxu0 %v879
        %1050 = vmatpush1.bf16.msra.mxu0 %v878
        %1051 = vmatprep.subr.bf16.mxu0 %v883
        %1052 = vmatpush1.bf16.msra.mxu0 %v882
        %1053 = vmatprep.subr.bf16.mxu0 0
        %1054 = vmatpush1.bf16.msra.mxu0 0
        %1055 = vmatprep.subr.bf16.mxu0 0
        %1056 = vmatpush1.bf16.msra.mxu0 0
        %1057 = vmatprep.subr.bf16.mxu0 0
        %1058 = vmatpush1.bf16.msra.mxu0 0
        %1059 = vmatprep.subr.bf16.mxu0 0
        %1060 = vmatpush1.bf16.msra.mxu0 0
        %1061 = vmatprep.subr.bf16.mxu0 0
        %1062 = vmatpush1.bf16.msra.mxu0 0
        %1063 = vmatprep.subr.bf16.mxu0 0
        %1064 = vmatpush1.bf16.msra.mxu0 0
        %1065 = vmatprep.subr.bf16.mxu0 0
        %1066 = vmatpush1.bf16.msra.mxu0 0
        %1067 = vmatprep.subr.bf16.mxu0 0
        %1068 = vmatpush1.bf16.msra.mxu0 0
        %1069 = vmatprep.mubr.bf16.mxu0 0
        %1070 = vmatmul.mubr.bf16.gmra.mrb[0].mxu0 %v956
        %v1071 = vpop.f32.mrb[0].mxu0
        %v1072 = vadd.f32 %v903, %v1071
        %v1073 = vpop.f32.mrb[0].mxu0
        %v1074 = vadd.f32 %v903, %v1073
        %v1075 = vpop.f32.mrb[0].mxu0
        %v1076 = vadd.f32 %v908, %v1075
        %v1077 = vpop.f32.mrb[0].mxu0
        %v1078 = vadd.f32 %v908, %v1077
        %1079 = vmatprep.mubr.bf16.mxu0 0
        %1080 = vmatmul.mubr.bf16.gmra.mrb[0].mxu0 %v957
        %v1081 = vpop.f32.mrb[0].mxu0
        %v1082 = vadd.f32 %v913, %v1081
        %v1083 = vpop.f32.mrb[0].mxu0
        %v1084 = vadd.f32 %v913, %v1083
        %v1085 = vpop.f32.mrb[0].mxu0
        %v1086 = vadd.f32 %v918, %v1085
        %v1087 = vpop.f32.mrb[0].mxu0
        %v1088 = vadd.f32 %v918, %v1087
        %1089 = vmatprep.mubr.bf16.mxu0 0
        %1090 = vmatmul.mubr.bf16.gmra.mrb[0].mxu0 %v958
        %v1091 = vpop.f32.mrb[0].mxu0
        %v1092 = vadd.f32 %v923, %v1091
        %v1093 = vpop.f32.mrb[0].mxu0
        %v1094 = vadd.f32 %v923, %v1093
        %v1095 = vpop.f32.mrb[0].mxu0
        %v1096 = vadd.f32 %v928, %v1095
        %v1097 = vpop.f32.mrb[0].mxu0
        %v1098 = vadd.f32 %v928, %v1097
        %1099 = vmatprep.mubr.bf16.mxu0 0
        %1100 = vmatmul.mubr.bf16.gmra.mrb[0].mxu0 %v959
        %v1101 = vpop.f32.mrb[0].mxu0
        %v1102 = vadd.f32 %v933, %v1101
        %v1103 = vpop.f32.mrb[0].mxu0
        %v1104 = vadd.f32 %v933, %v1103
        %v1105 = vpop.f32.mrb[0].mxu0
        %v1106 = vadd.f32 %v938, %v1105
        %v1107 = vpop.f32.mrb[0].mxu0
        %v1108 = vadd.f32 %v938, %v1107
        %1109 = vdwg.mxu0
        %v1110 = vmax.f32 %v999, 0.0
        %v1111 = vmax.f32 %v1001, 0.0
        %v1112 = vmax.f32 %v1072, 0.0
        %v1113 = vmax.f32 %v1074, 0.0
        %v1114 = vmax.f32 %v1003, 0.0
        %v1115 = vmax.f32 %v1005, 0.0
        %v1116 = vmax.f32 %v1076, 0.0
        %v1117 = vmax.f32 %v1078, 0.0
        %v1118 = vmax.f32 %v1009, 0.0
        %v1119 = vmax.f32 %v1011, 0.0
        %v1120 = vmax.f32 %v1082, 0.0
        %v1121 = vmax.f32 %v1084, 0.0
        %v1122 = vmax.f32 %v1013, 0.0
        %v1123 = vmax.f32 %v1015, 0.0
        %v1124 = vmax.f32 %v1086, 0.0
        %v1125 = vmax.f32 %v1088, 0.0
        %v1126 = vmax.f32 %v1019, 0.0
        %v1127 = vmax.f32 %v1021, 0.0
        %v1128 = vmax.f32 %v1092, 0.0
        %v1129 = vmax.f32 %v1094, 0.0
        %v1130 = vmax.f32 %v1023, 0.0
        %v1131 = vmax.f32 %v1025, 0.0
        %v1132 = vmax.f32 %v1096, 0.0
        %v1133 = vmax.f32 %v1098, 0.0
        %v1134 = vmax.f32 %v1029, 0.0
        %v1135 = vmax.f32 %v1031, 0.0
        %v1136 = vmax.f32 %v1102, 0.0
        %v1137 = vmax.f32 %v1104, 0.0
        %v1138 = vmax.f32 %v1033, 0.0
        %v1139 = vmax.f32 %v1035, 0.0
        %v1140 = vmax.f32 %v1106, 0.0
        %v1141 = vmax.f32 %v1108, 0.0
        %v1142 = vpack.c.bf16 %v1114, %v1110
        %v1143 = vpack.c.bf16 %v1115, %v1111
        %v1144 = vpack.c.bf16 %v1116, %v1112
        %v1145 = vpack.c.bf16 %v1117, %v1113
        %v1146 = vpack.c.bf16 %v1122, %v1118
        %v1147 = vpack.c.bf16 %v1123, %v1119
        %v1148 = vpack.c.bf16 %v1124, %v1120
        %v1149 = vpack.c.bf16 %v1125, %v1121
        %v1150 = vpack.c.bf16 %v1130, %v1126
        %v1151 = vpack.c.bf16 %v1131, %v1127
        %v1152 = vpack.c.bf16 %v1132, %v1128
        %v1153 = vpack.c.bf16 %v1133, %v1129
        %v1154 = vpack.c.bf16 %v1138, %v1134
        %v1155 = vpack.c.bf16 %v1139, %v1135
        %v1156 = vpack.c.bf16 %v1140, %v1136
        %v1157 = vpack.c.bf16 %v1141, %v1137
        %v1158 = vld [vmem:[%s5] sm:$0xf]
        %v1159 = vld [vmem:[%s5 + $0x4] sm:$0xf]
        %v1160 = vld [vmem:[%s5 + $0x8] sm:$0xf]
        %v1161 = vld [vmem:[%s5 + $0xc] sm:$0xf]
        %v1162 = vld [vmem:[%s6] sm:$0xff]
        %v1163 = vld [vmem:[%s6 + $0x8] sm:$0xff]
        %v1164 = vld [vmem:[%s6 + $0x10] sm:$0xff]
        %v1165 = vld [vmem:[%s6 + $0x18] sm:$0xff]
        %1167 = vset.pattern.permute.xlu0 0
        %1168 = vperm.xlu0 %1167, %v1162
        %v1169 = vpop.permute.xlu0 %1168
        %1172 = vset.pattern.permute.xlu0 0
        %1173 = vperm.xlu0 %1172, %v1163
        %v1174 = vpop.permute.xlu0 %1173
        %1177 = vset.pattern.permute.xlu0 0
        %1178 = vperm.xlu0 %1177, %v1164
        %v1179 = vpop.permute.xlu0 %1178
        %1182 = vset.pattern.permute.xlu0 0
        %1183 = vperm.xlu0 %1182, %v1165
        %v1184 = vpop.permute.xlu0 %1183
        %v1190 = vunpack.c.l.b16 %v1158
        %v1191 = vunpack.c.l.b16 %v1159
        %v1192 = vunpack.c.l.b16 %v1160
        %v1193 = vunpack.c.l.b16 %v1161
        %v1194 = vpack.c.b16 %v1191, %v1190
        %v1195 = vpack.c.b16 %v1193, %v1192
        %vm1196 = vcmask 523264
        %v1198 = vsel %vm1196, %v1194, 0
        %v1201 = vsel %vm1196, %v1195, 0
        %1203 = vmatprep.subr.bf16.mxu0 %v1143
        %1204 = vmatpush1.bf16.msra.mxu0 %v1142
        %1205 = vmatprep.subr.bf16.mxu0 %v1147
        %1206 = vmatpush1.bf16.msra.mxu0 %v1146
        %1207 = vmatprep.subr.bf16.mxu0 %v1151
        %1208 = vmatpush1.bf16.msra.mxu0 %v1150
        %1209 = vmatprep.subr.bf16.mxu0 %v1155
        %1210 = vmatpush1.bf16.msra.mxu0 %v1154
        %1211 = vmatprep.subr.bf16.mxu0 0
        %1212 = vmatpush1.bf16.msra.mxu0 0
        %1213 = vmatprep.subr.bf16.mxu0 0
        %1214 = vmatpush1.bf16.msra.mxu0 0
        %1215 = vmatprep.subr.bf16.mxu0 0
        %1216 = vmatpush1.bf16.msra.mxu0 0
        %1217 = vmatprep.subr.bf16.mxu0 0
        %1218 = vmatpush1.bf16.msra.mxu0 0
        %1219 = vmatprep.subr.bf16.mxu0 0
        %1220 = vmatpush1.bf16.msra.mxu0 0
        %1221 = vmatprep.subr.bf16.mxu0 0
        %1222 = vmatpush1.bf16.msra.mxu0 0
        %1223 = vmatprep.subr.bf16.mxu0 0
        %1224 = vmatpush1.bf16.msra.mxu0 0
        %1225 = vmatprep.subr.bf16.mxu0 0
        %1226 = vmatpush1.bf16.msra.mxu0 0
        %1227 = vmatprep.subr.bf16.mxu0 0
        %1228 = vmatpush1.bf16.msra.mxu0 0
        %1229 = vmatprep.subr.bf16.mxu0 0
        %1230 = vmatpush1.bf16.msra.mxu0 0
        %1231 = vmatprep.subr.bf16.mxu0 0
        %1232 = vmatpush1.bf16.msra.mxu0 0
        %1233 = vmatprep.subr.bf16.mxu0 0
        %1234 = vmatpush1.bf16.msra.mxu0 0
        %1235 = vmatprep.mubr.bf16.mxu0 0
        %1236 = vmatmul.mubr.bf16.gmra.mrb[0].mxu0 %v1198
        %v1237 = vpop.f32.mrb[0].mxu0
        %v1238 = vadd.f32 %v1169, %v1237
        %v1239 = vpop.f32.mrb[0].mxu0
        %v1240 = vadd.f32 %v1169, %v1239
        %v1241 = vpop.f32.mrb[0].mxu0
        %v1242 = vadd.f32 %v1174, %v1241
        %v1243 = vpop.f32.mrb[0].mxu0
        %v1244 = vadd.f32 %v1174, %v1243
        %1245 = vmatprep.mubr.bf16.mxu0 0
        %1246 = vmatmul.mubr.bf16.gmra.mrb[0].mxu0 %v1201
        %v1247 = vpop.f32.mrb[0].mxu0
        %v1248 = vadd.f32 %v1179, %v1247
        %v1249 = vpop.f32.mrb[0].mxu0
        %v1250 = vadd.f32 %v1179, %v1249
        %v1251 = vpop.f32.mrb[0].mxu0
        %v1252 = vadd.f32 %v1184, %v1251
        %v1253 = vpop.f32.mrb[0].mxu0
        %v1254 = vadd.f32 %v1184, %v1253
        %1255 = vdwg.mxu0
        %1256 = vmatprep.subr.bf16.mxu0 %v1145
        %1257 = vmatpush1.bf16.msra.mxu0 %v1144
        %1258 = vmatprep.subr.bf16.mxu0 %v1149
        %1259 = vmatpush1.bf16.msra.mxu0 %v1148
        %1260 = vmatprep.subr.bf16.mxu0 %v1153
        %1261 = vmatpush1.bf16.msra.mxu0 %v1152
        %1262 = vmatprep.subr.bf16.mxu0 %v1157
        %1263 = vmatpush1.bf16.msra.mxu0 %v1156
        %1264 = vmatprep.subr.bf16.mxu0 0
        %1265 = vmatpush1.bf16.msra.mxu0 0
        %1266 = vmatprep.subr.bf16.mxu0 0
        %1267 = vmatpush1.bf16.msra.mxu0 0
        %1268 = vmatprep.subr.bf16.mxu0 0
        %1269 = vmatpush1.bf16.msra.mxu0 0
        %1270 = vmatprep.subr.bf16.mxu0 0
        %1271 = vmatpush1.bf16.msra.mxu0 0
        %1272 = vmatprep.subr.bf16.mxu0 0
        %1273 = vmatpush1.bf16.msra.mxu0 0
        %1274 = vmatprep.subr.bf16.mxu0 0
        %1275 = vmatpush1.bf16.msra.mxu0 0
        %1276 = vmatprep.subr.bf16.mxu0 0
        %1277 = vmatpush1.bf16.msra.mxu0 0
        %1278 = vmatprep.subr.bf16.mxu0 0
        %1279 = vmatpush1.bf16.msra.mxu0 0
        %1280 = vmatprep.subr.bf16.mxu0 0
        %1281 = vmatpush1.bf16.msra.mxu0 0
        %1282 = vmatprep.subr.bf16.mxu0 0
        %1283 = vmatpush1.bf16.msra.mxu0 0
        %1284 = vmatprep.subr.bf16.mxu0 0
        %1285 = vmatpush1.bf16.msra.mxu0 0
        %1286 = vmatprep.subr.bf16.mxu0 0
        %1287 = vmatpush1.bf16.msra.mxu0 0
        %1288 = vmatprep.mubr.bf16.mxu0 0
        %1289 = vmatmul.mubr.bf16.gmra.mrb[0].mxu0 %v1198
        %v1290 = vpop.f32.mrb[0].mxu0
        %v1291 = vadd.f32 %v1169, %v1290
        %v1292 = vpop.f32.mrb[0].mxu0
        %v1293 = vadd.f32 %v1169, %v1292
        %v1294 = vpop.f32.mrb[0].mxu0
        %v1295 = vadd.f32 %v1174, %v1294
        %v1296 = vpop.f32.mrb[0].mxu0
        %v1297 = vadd.f32 %v1174, %v1296
        %1298 = vmatprep.mubr.bf16.mxu0 0
        %1299 = vmatmul.mubr.bf16.gmra.mrb[0].mxu0 %v1201
        %v1300 = vpop.f32.mrb[0].mxu0
        %v1301 = vadd.f32 %v1179, %v1300
        %v1302 = vpop.f32.mrb[0].mxu0
        %v1303 = vadd.f32 %v1179, %v1302
        %v1304 = vpop.f32.mrb[0].mxu0
        %v1305 = vadd.f32 %v1184, %v1304
        %v1306 = vpop.f32.mrb[0].mxu0
        %v1307 = vadd.f32 %v1184, %v1306
        %1308 = vdwg.mxu0
        %v1309 = vmax.f32 %v1238, 0.0
        %v1310 = vmax.f32 %v1240, 0.0
        %v1311 = vmax.f32 %v1291, 0.0
        %v1312 = vmax.f32 %v1293, 0.0
        %v1313 = vmax.f32 %v1242, 0.0
        %v1314 = vmax.f32 %v1244, 0.0
        %v1315 = vmax.f32 %v1295, 0.0
        %v1316 = vmax.f32 %v1297, 0.0
        %v1317 = vmax.f32 %v1248, 0.0
        %v1318 = vmax.f32 %v1250, 0.0
        %v1319 = vmax.f32 %v1301, 0.0
        %v1320 = vmax.f32 %v1303, 0.0
        %v1321 = vmax.f32 %v1252, 0.0
        %v1322 = vmax.f32 %v1254, 0.0
        %v1323 = vmax.f32 %v1305, 0.0
        %v1324 = vmax.f32 %v1307, 0.0
        %v1325 = vld [vmem:[%s7] sm:$0xff]
        %v1326 = vld [vmem:[%s7 + $0x8] sm:$0xff]
        %v1327 = vld [vmem:[%s7 + $0x10] sm:$0xff]
        %v1328 = vld [vmem:[%s7 + $0x18] sm:$0xff]
        %1330 = vset.pattern.permute.xlu0 0
        %1331 = vperm.xlu0 %1330, %v1325
        %v1332 = vpop.permute.xlu0 %1331
        %1335 = vset.pattern.permute.xlu0 0
        %1336 = vperm.xlu0 %1335, %v1326
        %v1337 = vpop.permute.xlu0 %1336
        %1340 = vset.pattern.permute.xlu0 0
        %1341 = vperm.xlu0 %1340, %v1327
        %v1342 = vpop.permute.xlu0 %1341
        %1345 = vset.pattern.permute.xlu0 0
        %1346 = vperm.xlu0 %1345, %v1328
        %v1347 = vpop.permute.xlu0 %1346
        %v1349 = vmul.f32 %v1309, %v1332
        %v1350 = vmul.f32 %v1310, %v1332
        %v1351 = vmul.f32 %v1311, %v1332
        %v1352 = vmul.f32 %v1312, %v1332
        %v1353 = vmul.f32 %v1313, %v1337
        %v1354 = vmul.f32 %v1314, %v1337
        %v1355 = vmul.f32 %v1315, %v1337
        %v1356 = vmul.f32 %v1316, %v1337
        %v1357 = vmul.f32 %v1317, %v1342
        %v1358 = vmul.f32 %v1318, %v1342
        %v1359 = vmul.f32 %v1319, %v1342
        %v1360 = vmul.f32 %v1320, %v1342
        %v1361 = vmul.f32 %v1321, %v1347
        %v1362 = vmul.f32 %v1322, %v1347
        %v1363 = vmul.f32 %v1323, %v1347
        %v1364 = vmul.f32 %v1324, %v1347
        %v1365 = vadd.f32 %v1349, %v1353
        %v1366 = vadd.f32 %v1365, %v1357
        %v1367 = vadd.f32 %v1366, %v1361
        %v1368 = vrot.slane %v1367, 4
        %v1369 = vadd.f32 %v1367, %v1368
        %v1370 = vrot.slane %v1369, 2
        %v1371 = vadd.f32 %v1369, %v1370
        %v1372 = vrot.slane %v1371, 1
        %v1373 = vadd.f32 %v1371, %v1372
        %v1374 = vadd.f32 %v1350, %v1354
        %v1375 = vadd.f32 %v1374, %v1358
        %v1376 = vadd.f32 %v1375, %v1362
        %v1377 = vrot.slane %v1376, 4
        %v1378 = vadd.f32 %v1376, %v1377
        %v1379 = vrot.slane %v1378, 2
        %v1380 = vadd.f32 %v1378, %v1379
        %v1381 = vrot.slane %v1380, 1
        %v1382 = vadd.f32 %v1380, %v1381
        %v1383 = vadd.f32 %v1351, %v1355
        %v1384 = vadd.f32 %v1383, %v1359
        %v1385 = vadd.f32 %v1384, %v1363
        %v1386 = vrot.slane %v1385, 4
        %v1387 = vadd.f32 %v1385, %v1386
        %v1388 = vrot.slane %v1387, 2
        %v1389 = vadd.f32 %v1387, %v1388
        %v1390 = vrot.slane %v1389, 1
        %v1391 = vadd.f32 %v1389, %v1390
        %v1392 = vadd.f32 %v1352, %v1356
        %v1393 = vadd.f32 %v1392, %v1360
        %v1394 = vadd.f32 %v1393, %v1364
        %v1395 = vrot.slane %v1394, 4
        %v1396 = vadd.f32 %v1394, %v1395
        %v1397 = vrot.slane %v1396, 2
        %v1398 = vadd.f32 %v1396, %v1397
        %v1399 = vrot.slane %v1398, 1
        %v1400 = vadd.f32 %v1398, %v1399
        %s1401 = sld [smem:[#allocation2]]
        %v1402 = vstv %s1401
        %v1403 = vadd.f32 %v1373, %v1402
        %v1404 = vadd.f32 %v1382, %v1402
        %v1405 = vadd.f32 %v1391, %v1402
        %v1406 = vadd.f32 %v1400, %v1402
        %v1411 = vcombine.low %v1403, %v1404
        %v1412 = vcombine.low %v1405, %v1406
        %v1414 = vunpack.c.l.s4 1966171168
        %v1415 = vunpack.c.0.s8 %v1414
        %v1416 = vlaneseq
        %v1417 = vshrl.u32 %v1416, 7
        %v1418 = vsub.s32 %v1415, %v1417
        %v1419 = vrot.slane %v1411, %v1418
        %v1421 = vunpack.c.l.s4 1966171168
        %v1422 = vunpack.c.0.s8 %v1421
        %v1423 = vlaneseq
        %v1424 = vshrl.u32 %v1423, 7
        %v1425 = vsub.s32 %v1422, %v1424
        %v1426 = vrot.slane %v1412, %v1425
        %v1427 = vcombine.low %v1419, %v1426
        %v1429 = vunpack.c.l.s4 1966171168
        %v1430 = vunpack.c.0.s8 %v1429
        %v1431 = vlaneseq
        %v1432 = vshrl.u32 %v1431, 7
        %v1433 = vsub.s32 %v1430, %v1432
        %v1434 = vrot.slane %v1427, %v1433
        %v1436 = vlaneseq
        %vm1437 = vcmp.ge.s32.totalorder %v1436, 0
        %vm1438 = vcmp.lt.s32.totalorder %v1436, 512
        %vm1439 = vmand %vm1437, %vm1438
        %1440 = vst.msk [vmem:[%s357] sm:$0xf] %vm1439, %v1434
        %s1441 = sand.u32 %s226, 1
        %s1442 = scalar_lea.sflag [#allocation5], %s1441
        %s1443 = sand.u32 %s226, 1
        %s1444 = smul.addr %s1443, 4
        %s1445 = scalar_lea.vmem [#allocation4], %s1444
        // Predicated region
        $region80: #{regression_model_forward.1} parent=74 // pred_check
          %p1446 = pneg %p236
        $region81: #{regression_model_forward.1} parent=74 // pred_check_branch
          %1448 = sbr.rel (%p1446) target = $region83
        $region82: #{regression_model_forward.1} parent=74 // pred_region
          %s1449 = smul.u32 4, %s24
          %s1451 = ssub.s32 64, 64
          %1452 = vsyncadd %s1442, %s1451
          %s1453 = smul.addr %s1449, 16
          %s1454 = scalar_lea.hbm %s9, %s1453
          %s1456 = sshll.u32 %s1445, 4
          %s1457 = int_to_ptr.vmem [resolvable:$true] %s1456
          %1459 = dma.vmem_to_hbm [thread:$0]  %s1457, 64, %s1454, %s1442
        $region83: #{regression_model_forward.1} parent=74 // pred_fallthru
          _
      $region75: #{regression_model_forward.1} parent=5 // pred_fallthru
        _
      %p1460 = scmp.le.s32.totalorder 2, %s19
      // Predicated region
      $region84: #{regression_model_forward.1} parent=5 // pred_check
        %p1461 = pneg %p1460
      $region85: #{regression_model_forward.1} parent=5 // pred_check_branch
        %1463 = sbr.rel (%p1461) target = $region87
      $region86: #{regression_model_forward.1} parent=5 // pred_region
        %s1464 = ssub.s32 %s19, 2
        // Predicated region
        $region88: #{regression_model_forward.1} parent=86 // pred_check
          %p1465 = pneg %p242
        $region89: #{regression_model_forward.1} parent=86 // pred_check_branch
          %1467 = sbr.rel (%p1465) target = $region91
        $region90: #{regression_model_forward.1} parent=86 // pred_region
          %s1468 = sand.u32 %s227, 1
          %s1469 = scalar_lea.sflag [#allocation5], %s1468
          %s1470 = sand.u32 %s227, 1
          %s1471 = smul.addr %s1470, 4
          %s1472 = scalar_lea.vmem [#allocation4], %s1471
          %1473 = dma.done %s1469, 64
        $region91: #{regression_model_forward.1} parent=86 // pred_fallthru
          _
      $region87: #{regression_model_forward.1} parent=5 // pred_fallthru
        _
    $region6: #{regression_model_forward.1} parent=1 // loop_footer
      %s23 = sadd.s32 1, %s19
    $region7: #{regression_model_forward.1} parent=1 // loop_footer_branch
      %18 = sbr.rel target = $region3
    $region8: #{regression_model_forward.1} parent=1 // loop_exit
      _
    %1474 = vsyncpa [#allocation5], 1
    %s1475 = scalar_lea.sflag [#allocation5], 1
    %1476 = vsyncpa %s1475, 1

</llo_original>
